<compile_context>
chip_gen: v6e
topology: v6e:2x2x1
jax: 0.10.0
libtpu: 0.0.40
codegen_flags: <defaults>
</compile_context>

<pallas_src>
import functools

import jax
import jax.numpy as jnp
from jax import lax
from jax.experimental import pallas as pl
from jax.experimental.pallas import tpu as pltpu

channel_scale = [0.25, 0.5, 0.75, 1.0]
BN_EPS = 1e-5


# --------------------------- hardware-aware budgets ---------------------------

def _vmem_limit_bytes():
    """Generation-aware scoped-VMEM budget (v7x: 64 MiB physical, v5e/v6e: 128)."""
    cap = 128 * 1024 * 1024
    try:
        cap = int(pltpu.get_tpu_info().vmem_capacity_bytes)
    except Exception:
        pass
    return min(int(cap * 0.7), 100 * 1024 * 1024)


def _pick_c_tile(C, H, W, Ho, Wo, vmem_limit):
    """Largest channel block for the depthwise kernel that fits the budget."""
    budget = max(vmem_limit // 3, 1 << 20)

    def nbytes(tc):
        return 4 * (tc * (H + 2) * (W + 2)      # halo scratch (single-buffered)
                    + 2 * tc * H * W            # input block (double-buffered)
                    + 2 * tc * Ho * Wo          # output block (double-buffered)
                    + 2 * tc * H * 9)           # expanded taps

    divs = [d for d in range(1, C + 1) if C % d == 0]
    fitting = [d for d in divs if nbytes(d) <= budget]
    return max(fitting) if fitting else 1


def _pick_hw_tile(HW, C, O, vmem_limit):
    """Largest lane-dense (multiple-of-128 or full) HW tile that fits the budget.
    Single big tiles minimize per-step overhead (v5e/v6e single-TC advice)."""
    budget = max(vmem_limit // 3, 1 << 20)
    cands = [HW] + [d for d in range(128, HW, 128) if HW % d == 0]
    fitting = [t for t in cands if 8 * t * (C + O) <= budget]
    if fitting:
        return max(fitting)
    return min(cands[1:]) if len(cands) > 1 else HW


# --------------------------- Pallas kernels ---------------------------------

def _dw3x3_stats_kernel(x_ref, w_ref, out_ref, stats_ref, xp_ref, *, stride, H, W):
    """Depthwise 3x3 conv (pad=1) on NCHW blocks + fused BN1 partial statistics.

    x_ref    : (1, TC, H, W)    NCHW input block, read directly (no XLA prologue)
    w_ref    : (TC, H, 9)       taps pre-broadcast along H -> lane-only broadcast
    out_ref  : (1, TC, Ho, Wo)
    stats_ref: (TC, 1, 2)       [sum, sumsq]; accumulated in-kernel across batch
    xp_ref   : (TC, H+2, W+2)   VMEM scratch holding the halo-padded plane
    """
    n = pl.program_id(1)

    @pl.when(n == 0)
    def _():
        # Zero once per channel block; the halo border is never written after.
        xp_ref[...] = jnp.zeros_like(xp_ref)

    xp_ref[:, 1:H + 1, 1:W + 1] = x_ref[0]
    xp = xp_ref[...]                                        # (TC, H+2, W+2)

    acc = None
    for dy in range(3):                                     # 9 unit-stride tap FMAs
        for dx in range(3):
            tap = xp[:, dy:dy + H, dx:dx + W]               # (TC, H, W)
            wk = w_ref[:, :, 3 * dy + dx:3 * dy + dx + 1]   # (TC, H, 1)
            term = tap * wk
            acc = term if acc is None else acc + term
    if stride > 1:
        # One subsample at the end instead of 9 strided tap slices.
        acc = acc[:, ::stride, ::stride]                    # (TC, Ho, Wo)
    out_ref[0] = acc

    s = jnp.sum(jnp.sum(acc, axis=2, keepdims=True), axis=1, keepdims=True)
    q = jnp.sum(jnp.sum(acc * acc, axis=2, keepdims=True), axis=1, keepdims=True)

    @pl.when(n == 0)
    def _():
        stats_ref[...] = jnp.zeros_like(stats_ref)
    stats_ref[:, :, 0:1] += s
    stats_ref[:, :, 1:2] += q


def _bn1_relu_pw_bn2_relu_kernel(y_ref, s1_ref, g_ref, b_ref, w_ref,
                                 out_ref, s2_ref, *, count, eps):
    """Two-phase fused stage: BN1(batch stats)+ReLU -> 1x1 conv -> BN2 -> ReLU.

    Phase 0: accumulate BN2 [sum, sumsq] of the 1x1 result into VMEM scratch
             (the output block index is pinned, so nothing is written to HBM).
    Phase 1: recompute the (cheap) product and store the normalized, already
             channel-major result with lane-dense stores.
    """
    p = pl.program_id(0)
    n = pl.program_id(1)
    h = pl.program_id(2)

    C = y_ref.shape[1]
    inv_cnt = 1.0 / count

    # BN1 scale/shift from the fused kernel-1 statistics (C elements; cheap).
    s1 = s1_ref[:, 0, 0:1]                                   # (C, 1)
    q1 = s1_ref[:, 0, 1:2]
    mean1 = s1 * inv_cnt
    var1 = jnp.maximum(q1 * inv_cnt - mean1 * mean1, 0.0)    # biased, like torch BN fwd
    scale1 = g_ref[...] * lax.rsqrt(var1 + eps)
    shift1 = b_ref[...] - mean1 * scale1

    t = jnp.maximum(y_ref[0] * scale1 + shift1, 0.0)         # (C, THW), lane-dense

    if C <= 32:
        # Narrow layers: O*C VPU broadcast-FMAs; the MXU would be <1% utilized.
        z = None
        for c in range(C):
            term = w_ref[:, c:c + 1] * t[c:c + 1, :]          # (O,1)*(1,THW) -> (O,THW)
            z = term if z is None else z + term
    else:
        # TODO(synk): cast operands to bf16 here for wide layers to hit MXU peak.
        z = jnp.dot(w_ref[...], t, preferred_element_type=jnp.float32)

    @pl.when((p == 0) & (n == 0) & (h == 0))
    def _():
        s2_ref[...] = jnp.zeros_like(s2_ref)

    @pl.when(p == 0)
    def _():
        s2_ref[:, 0:1] += jnp.sum(z, axis=1, keepdims=True)
        s2_ref[:, 1:2] += jnp.sum(z * z, axis=1, keepdims=True)

    @pl.when(p == 1)
    def _():
        mean2 = s2_ref[:, 0:1] * inv_cnt
        var2 = jnp.maximum(s2_ref[:, 1:2] * inv_cnt - mean2 * mean2, 0.0)
        scale2 = lax.rsqrt(var2 + eps)                        # second_bn: affine=False
        shift2 = -mean2 * scale2
        out_ref[0] = jnp.maximum(z * scale2 + shift2, 0.0)    # (O, THW) lane-dense store


# --------------------------- Pallas wrappers ---------------------------------

def depthwise_conv3x3_stats(x, w, stride, vmem_limit):
    """x: (N, C, H, W) NCHW; w: (C, 3, 3); padding=1, groups=C, given stride.
    Returns out1 (N, C, Ho, Wo) and fused per-channel [sum, sumsq] stats."""
    N, C, H, W = x.shape
    Ho = (H - 1) // stride + 1
    Wo = (W - 1) // stride + 1
    TC = _pick_c_tile(C, H, W, Ho, Wo, vmem_limit)
    CB = C // TC
    # Taps pre-broadcast along H (tiny C*H*9 array; keeps the in-kernel weight
    # broadcast lane-only).  This is NOT a pass over x.
    w_exp = jnp.broadcast_to(w.reshape(C, 1, 9), (C, H, 9))

    kernel = functools.partial(_dw3x3_stats_kernel, stride=stride, H=H, W=W)
    out1, stats1 = pl.pallas_call(
        kernel,
        out_shape=(jax.ShapeDtypeStruct((N, C, Ho, Wo), jnp.float32),
                   jax.ShapeDtypeStruct((C, 1, 2), jnp.float32)),
        grid_spec=pltpu.PrefetchScalarGridSpec(
            num_scalar_prefetch=0,
            grid=(CB, N),
            in_specs=[
                pl.BlockSpec((1, TC, H, W), lambda c, n: (n, c, 0, 0)),
                pl.BlockSpec((TC, H, 9), lambda c, n: (c, 0, 0)),
            ],
            out_specs=[
                pl.BlockSpec((1, TC, Ho, Wo), lambda c, n: (n, c, 0, 0)),
                pl.BlockSpec((TC, 1, 2), lambda c, n: (c, 0, 0)),
            ],
            scratch_shapes=[pltpu.VMEM((TC, H + 2, W + 2), jnp.float32)],
        ),
        compiler_params=pltpu.CompilerParams(
            dimension_semantics=("parallel", "arbitrary"),
            vmem_limit_bytes=vmem_limit),
    )(x, w_exp)
    return out1, stats1, (N, Ho, Wo)


def bn1_relu_pw1x1_bn2_relu(out1, stats1, gamma, beta, w_pw, shape_nhw, vmem_limit):
    """Fused BN1+ReLU+1x1conv+BN2+ReLU, emitting the NCHW result directly."""
    N, Ho, Wo = shape_nhw
    HW = Ho * Wo
    C = out1.shape[1]
    O = w_pw.shape[0]
    y = out1.reshape(N, C, HW)                 # free bitcast reshape (channel-major)
    THW = _pick_hw_tile(HW, C, O, vmem_limit)
    HWB = HW // THW

    # TODO(synk): per-core stats partials would let the (n, h) axes stay
    # 'parallel' on v7x megacore; kept 'arbitrary' for the shared accumulator.
    kernel = functools.partial(_bn1_relu_pw_bn2_relu_kernel,
                               count=float(N * HW), eps=BN_EPS)
    out = pl.pallas_call(
        kernel,
        out_shape=jax.ShapeDtypeStruct((N, O, HW), jnp.float32),
        grid_spec=pltpu.PrefetchScalarGridSpec(
            num_scalar_prefetch=0,
            grid=(2, N, HWB),
            in_specs=[
                pl.BlockSpec((1, C, THW), lambda p, n, h: (n, 0, h)),
                pl.BlockSpec((C, 1, 2), lambda p, n, h: (0, 0, 0)),
                pl.BlockSpec((C, 1), lambda p, n, h: (0, 0)),
                pl.BlockSpec((C, 1), lambda p, n, h: (0, 0)),
                pl.BlockSpec((O, C), lambda p, n, h: (0, 0)),
            ],
            # Phase 0 pins the output block index so no partial/garbage block is
            # ever flushed; phase 1 writes every block exactly once, lane-dense.
            out_specs=pl.BlockSpec((1, O, THW), lambda p, n, h: (p * n, 0, p * h)),
            scratch_shapes=[pltpu.VMEM((O, 2), jnp.float32)],
        ),
        compiler_params=pltpu.CompilerParams(
            dimension_semantics=("arbitrary", "arbitrary", "arbitrary"),
            vmem_limit_bytes=vmem_limit),
    )(y, stats1, gamma.reshape(C, 1), beta.reshape(C, 1), w_pw)
    return out.reshape(N, O, Ho, Wo)           # free bitcast reshape (NCHW)


# --------------------------- Module equivalent -------------------------------

class DW3x3PW1x1:
    def __init__(self, base_inp, base_oup, stride, key):
        assert stride in (1, 2)
        self.stride = stride
        self.max_scale = channel_scale[-1]
        self.base_inp = base_inp
        self.base_oup = base_oup
        self.max_inp = int(self.max_scale * base_inp)
        self.max_oup = int(self.max_scale * base_oup)
        self._vmem_limit = _vmem_limit_bytes()
        ks = jax.random.split(key, 8)

        def lin(kw, kb, out_f, in_f):    # torch.nn.Linear-style uniform init
            bound = 1.0 / (in_f ** 0.5)
            W = jax.random.uniform(kw, (out_f, in_f), jnp.float32, -bound, bound)
            b = jax.random.uniform(kb, (out_f,), jnp.float32, -bound, bound)
            return W, b

        self.fc11 = lin(ks[0], ks[1], 32, 2)
        self.fc12 = lin(ks[2], ks[3], self.max_inp * 1 * 3 * 3, 32)
        self.fc21 = lin(ks[4], ks[5], 32, 2)
        self.fc22 = lin(ks[6], ks[7], self.max_oup * self.max_inp * 1 * 1, 32)
        # first_bn: affine params (PyTorch default init gamma=1, beta=0) per scale
        self.first_bn = [
            (jnp.ones((int(base_inp * s),), jnp.float32),
             jnp.zeros((int(base_inp * s),), jnp.float32))
            for s in channel_scale
        ]
        # second_bn: affine=False -> no parameters.
        # TODO(synk): running-mean/var tracking (a train-time BatchNorm side effect)
        # is not reproduced; only the forward normalization is.

    def _make_weights(self, inp_scale_id, oup_scale_id):
        inp_scale = channel_scale[inp_scale_id]
        oup_scale = channel_scale[oup_scale_id]
        inp = int(self.base_inp * inp_scale)
        oup = int(self.base_oup * oup_scale)
        scale_t = jnp.array([inp_scale / self.max_scale,
                             oup_scale / self.max_scale], jnp.float32)
        fc11_out = jax.nn.relu(scale_t @ self.fc11[0].T + self.fc11[1])
        dw_w = (fc11_out @ self.fc12[0].T + self.fc12[1]).reshape(
            self.max_inp, 1, 3, 3)
        fc21_out = jax.nn.relu(scale_t @ self.fc21[0].T + self.fc21[1])
        pw_w = (fc21_out @ self.fc22[0].T + self.fc22[1]).reshape(
            self.max_oup, self.max_inp, 1, 1)
        return inp, oup, dw_w[:inp, 0], pw_w[:oup, :inp, 0, 0]

    def __call__(self, x, inp_scale_id, oup_scale_id):
        # hypernetwork: tiny linears generating conv weights (JAX glue)
        inp, oup, dw_w, pw_w = self._make_weights(inp_scale_id, oup_scale_id)
        gamma, beta = self.first_bn[inp_scale_id]

        # ---- hot path: two fused Pallas kernels, channel-major end-to-end ----
        out1, stats1, shape_nhw = depthwise_conv3x3_stats(
            x, dw_w, self.stride, self._vmem_limit)
        return bn1_relu_pw1x1_bn2_relu(
            out1, stats1, gamma, beta, pw_w, shape_nhw, self._vmem_limit)

    def reference_forward(self, x, inp_scale_id, oup_scale_id):
        """Pure-JAX (XLA) reference used only for numerical verification."""
        inp, oup, dw_w, pw_w = self._make_weights(inp_scale_id, oup_scale_id)
        gamma, beta = self.first_bn[inp_scale_id]
        out = jax.lax.conv_general_dilated(
            x, dw_w[:, None], (self.stride, self.stride), ((1, 1), (1, 1)),
            dimension_numbers=('NCHW', 'OIHW', 'NCHW'), feature_group_count=inp)
        mean = jnp.mean(out, axis=(0, 2, 3), keepdims=True)
        var = jnp.var(out, axis=(0, 2, 3), keepdims=True)
        out = (out - mean) / jnp.sqrt(var + BN_EPS)
        out = out * gamma[None, :, None, None] + beta[None, :, None, None]
        out = jax.nn.relu(out)
        out = jnp.einsum('nchw,oc->nohw', out, pw_w)
        mean2 = jnp.mean(out, axis=(0, 2, 3), keepdims=True)
        var2 = jnp.var(out, axis=(0, 2, 3), keepdims=True)
        out = (out - mean2) / jnp.sqrt(var2 + BN_EPS)
        return jax.nn.relu(out)


if __name__ == "__main__":
    key = jax.random.PRNGKey(0)
    k_param, k_x = jax.random.split(key)

    base_inp, base_oup, stride = 4, 8, 1
    inp_scale_id, oup_scale_id = 3, 3          # -> inp=4, oup=8 (max scale)

    module = DW3x3PW1x1(base_inp, base_oup, stride, k_param)
    inp = int(base_inp * channel_scale[inp_scale_id])
    oup = int(base_oup * channel_scale[oup_scale_id])

    x = jax.random.normal(k_x, (2, inp, 16, 16), jnp.float32)
    out = jax.block_until_ready(module(x, inp_scale_id, oup_scale_id))
    assert out.shape == (2, oup, 16 // stride, 16 // stride), out.shape

    ref = jax.block_until_ready(
        module.reference_forward(x, inp_scale_id, oup_scale_id))
    max_err = float(jnp.max(jnp.abs(out - ref)))
    assert max_err < 2e-3, f"max abs error vs reference: {max_err}"
    print("KERNEL_OK")
</pallas_src>

<mosaic_0001>
module attributes {stable_mosaic.version = 11 : i64} {
  func.func @_dw3x3_stats_kernel(%arg0: i32, %arg1: i32, %arg2: memref<1x4x16x16xf32, #tpu.memory_space<vmem>>, %arg3: memref<4x16x9xf32, #tpu.memory_space<vmem>>, %arg4: memref<1x4x16x16xf32, #tpu.memory_space<vmem>>, %arg5: memref<4x1x2xf32, #tpu.memory_space<vmem>>, %arg6: memref<4x18x18xf32, #tpu.memory_space<vmem>>) attributes {dimension_semantics = [#tpu.dimension_semantics<parallel>, #tpu.dimension_semantics<arbitrary>], iteration_bounds = array<i64: 1, 2>, scalar_prefetch = 0 : i64, scratch_operands = 1 : i64, tpu.core_type = #tpu.core_type<tc>, window_params = [{transform_indices = @transform_0, window_bounds = array<i64: 1, 4, 16, 16>}, {transform_indices = @transform_1, window_bounds = array<i64: 4, 16, 9>}, {transform_indices = @transform_2, window_bounds = array<i64: 1, 4, 16, 16>}, {transform_indices = @transform_3, window_bounds = array<i64: 4, 1, 2>}]} {
    %c0_i32 = arith.constant 0 : i32
    %0 = arith.cmpi eq, %arg1, %c0_i32 : i32
    %1 = arith.extui %0 : i1 to i32
    %c0_i32_0 = arith.constant 0 : i32
    %2 = arith.cmpi ne, %1, %c0_i32_0 : i32
    scf.if %2 {
      %cst_50 = arith.constant 0.000000e+00 : f32
      %72 = vector.broadcast %cst_50 : f32 to vector<4x18x18xf32>
      %c0_51 = arith.constant 0 : index
      %c0_52 = arith.constant 0 : index
      %c0_53 = arith.constant 0 : index
      %73 = vector.load %arg6[%c0_51, %c0_52, %c0_53] : memref<4x18x18xf32, #tpu.memory_space<vmem>>, vector<4x18x18xf32>
      tpu.vector_store %arg6[%c0_51, %c0_52, %c0_53], %72 {strides = array<i32>} : memref<4x18x18xf32, #tpu.memory_space<vmem>>, vector<4x18x18xf32>,
    } else {
    }
    %c0 = arith.constant 0 : index
    %c0_1 = arith.constant 0 : index
    %c0_2 = arith.constant 0 : index
    %c0_3 = arith.constant 0 : index
    %3 = vector.load %arg2[%c0, %c0_1, %c0_2, %c0_3] : memref<1x4x16x16xf32, #tpu.memory_space<vmem>>, vector<1x4x16x16xf32>
    %4 = vector.shape_cast %3 : vector<1x4x16x16xf32> to vector<4x16x16xf32>
    %c0_4 = arith.constant 0 : index
    %c1 = arith.constant 1 : index
    %c1_5 = arith.constant 1 : index
    %5 = vector.load %arg6[%c0_4, %c1, %c1_5] : memref<4x18x18xf32, #tpu.memory_space<vmem>>, vector<4x16x16xf32>
    tpu.vector_store %arg6[%c0_4, %c1, %c1_5], %4 {strides = array<i32>} : memref<4x18x18xf32, #tpu.memory_space<vmem>>, vector<4x16x16xf32>,
    %c0_6 = arith.constant 0 : index
    %c0_7 = arith.constant 0 : index
    %c0_8 = arith.constant 0 : index
    %6 = vector.load %arg6[%c0_6, %c0_7, %c0_8] : memref<4x18x18xf32, #tpu.memory_space<vmem>>, vector<4x18x18xf32>
    %7 = vector.extract_strided_slice %6 {offsets = [0, 0, 0], sizes = [4, 16, 16], strides = [1, 1, 1]} : vector<4x18x18xf32> to vector<4x16x16xf32>
    %c0_9 = arith.constant 0 : index
    %c0_10 = arith.constant 0 : index
    %c0_11 = arith.constant 0 : index
    %8 = vector.load %arg3[%c0_9, %c0_10, %c0_11] : memref<4x16x9xf32, #tpu.memory_space<vmem>>, vector<4x16x1xf32>
    %9 = vector.broadcast %8 : vector<4x16x1xf32> to vector<4x16x16xf32>
    %10 = arith.mulf %7, %9 : vector<4x16x16xf32>
    %11 = vector.extract_strided_slice %6 {offsets = [0, 0, 1], sizes = [4, 16, 16], strides = [1, 1, 1]} : vector<4x18x18xf32> to vector<4x16x16xf32>
    %c0_12 = arith.constant 0 : index
    %c0_13 = arith.constant 0 : index
    %c1_14 = arith.constant 1 : index
    %12 = vector.load %arg3[%c0_12, %c0_13, %c1_14] : memref<4x16x9xf32, #tpu.memory_space<vmem>>, vector<4x16x1xf32>
    %13 = vector.broadcast %12 : vector<4x16x1xf32> to vector<4x16x16xf32>
    %14 = arith.mulf %11, %13 : vector<4x16x16xf32>
    %15 = arith.addf %10, %14 : vector<4x16x16xf32>
    %16 = vector.extract_strided_slice %6 {offsets = [0, 0, 2], sizes = [4, 16, 16], strides = [1, 1, 1]} : vector<4x18x18xf32> to vector<4x16x16xf32>
    %c0_15 = arith.constant 0 : index
    %c0_16 = arith.constant 0 : index
    %c2 = arith.constant 2 : index
    %17 = vector.load %arg3[%c0_15, %c0_16, %c2] : memref<4x16x9xf32, #tpu.memory_space<vmem>>, vector<4x16x1xf32>
    %18 = vector.broadcast %17 : vector<4x16x1xf32> to vector<4x16x16xf32>
    %19 = arith.mulf %16, %18 : vector<4x16x16xf32>
    %20 = arith.addf %15, %19 : vector<4x16x16xf32>
    %21 = vector.extract_strided_slice %6 {offsets = [0, 1, 0], sizes = [4, 16, 16], strides = [1, 1, 1]} : vector<4x18x18xf32> to vector<4x16x16xf32>
    %c0_17 = arith.constant 0 : index
    %c0_18 = arith.constant 0 : index
    %c3 = arith.constant 3 : index
    %22 = vector.load %arg3[%c0_17, %c0_18, %c3] : memref<4x16x9xf32, #tpu.memory_space<vmem>>, vector<4x16x1xf32>
    %23 = vector.broadcast %22 : vector<4x16x1xf32> to vector<4x16x16xf32>
    %24 = arith.mulf %21, %23 : vector<4x16x16xf32>
    %25 = arith.addf %20, %24 : vector<4x16x16xf32>
    %26 = vector.extract_strided_slice %6 {offsets = [0, 1, 1], sizes = [4, 16, 16], strides = [1, 1, 1]} : vector<4x18x18xf32> to vector<4x16x16xf32>
    %c0_19 = arith.constant 0 : index
    %c0_20 = arith.constant 0 : index
    %c4 = arith.constant 4 : index
    %27 = vector.load %arg3[%c0_19, %c0_20, %c4] : memref<4x16x9xf32, #tpu.memory_space<vmem>>, vector<4x16x1xf32>
    %28 = vector.broadcast %27 : vector<4x16x1xf32> to vector<4x16x16xf32>
    %29 = arith.mulf %26, %28 : vector<4x16x16xf32>
    %30 = arith.addf %25, %29 : vector<4x16x16xf32>
    %31 = vector.extract_strided_slice %6 {offsets = [0, 1, 2], sizes = [4, 16, 16], strides = [1, 1, 1]} : vector<4x18x18xf32> to vector<4x16x16xf32>
    %c0_21 = arith.constant 0 : index
    %c0_22 = arith.constant 0 : index
    %c5 = arith.constant 5 : index
    %32 = vector.load %arg3[%c0_21, %c0_22, %c5] : memref<4x16x9xf32, #tpu.memory_space<vmem>>, vector<4x16x1xf32>
    %33 = vector.broadcast %32 : vector<4x16x1xf32> to vector<4x16x16xf32>
    %34 = arith.mulf %31, %33 : vector<4x16x16xf32>
    %35 = arith.addf %30, %34 : vector<4x16x16xf32>
    %36 = vector.extract_strided_slice %6 {offsets = [0, 2, 0], sizes = [4, 16, 16], strides = [1, 1, 1]} : vector<4x18x18xf32> to vector<4x16x16xf32>
    %c0_23 = arith.constant 0 : index
    %c0_24 = arith.constant 0 : index
    %c6 = arith.constant 6 : index
    %37 = vector.load %arg3[%c0_23, %c0_24, %c6] : memref<4x16x9xf32, #tpu.memory_space<vmem>>, vector<4x16x1xf32>
    %38 = vector.broadcast %37 : vector<4x16x1xf32> to vector<4x16x16xf32>
    %39 = arith.mulf %36, %38 : vector<4x16x16xf32>
    %40 = arith.addf %35, %39 : vector<4x16x16xf32>
    %41 = vector.extract_strided_slice %6 {offsets = [0, 2, 1], sizes = [4, 16, 16], strides = [1, 1, 1]} : vector<4x18x18xf32> to vector<4x16x16xf32>
    %c0_25 = arith.constant 0 : index
    %c0_26 = arith.constant 0 : index
    %c7 = arith.constant 7 : index
    %42 = vector.load %arg3[%c0_25, %c0_26, %c7] : memref<4x16x9xf32, #tpu.memory_space<vmem>>, vector<4x16x1xf32>
    %43 = vector.broadcast %42 : vector<4x16x1xf32> to vector<4x16x16xf32>
    %44 = arith.mulf %41, %43 : vector<4x16x16xf32>
    %45 = arith.addf %40, %44 : vector<4x16x16xf32>
    %46 = vector.extract_strided_slice %6 {offsets = [0, 2, 2], sizes = [4, 16, 16], strides = [1, 1, 1]} : vector<4x18x18xf32> to vector<4x16x16xf32>
    %c0_27 = arith.constant 0 : index
    %c0_28 = arith.constant 0 : index
    %c8 = arith.constant 8 : index
    %47 = vector.load %arg3[%c0_27, %c0_28, %c8] : memref<4x16x9xf32, #tpu.memory_space<vmem>>, vector<4x16x1xf32>
    %48 = vector.broadcast %47 : vector<4x16x1xf32> to vector<4x16x16xf32>
    %49 = arith.mulf %46, %48 : vector<4x16x16xf32>
    %50 = arith.addf %45, %49 : vector<4x16x16xf32>
    %c0_29 = arith.constant 0 : index
    %c0_30 = arith.constant 0 : index
    %c0_31 = arith.constant 0 : index
    %c0_32 = arith.constant 0 : index
    %51 = vector.load %arg4[%c0_29, %c0_30, %c0_31, %c0_32] : memref<1x4x16x16xf32, #tpu.memory_space<vmem>>, vector<1x4x16x16xf32>
    %52 = vector.shape_cast %51 : vector<1x4x16x16xf32> to vector<4x16x16xf32>
    %53 = vector.shape_cast %50 : vector<4x16x16xf32> to vector<1x4x16x16xf32>
    tpu.vector_store %arg4[%c0_29, %c0_30, %c0_31, %c0_32], %53 {strides = array<i32>} : memref<1x4x16x16xf32, #tpu.memory_space<vmem>>, vector<1x4x16x16xf32>,
    %cst = arith.constant dense<0.000000e+00> : vector<4x16xf32>
    %54 = vector.multi_reduction <add>, %50, %cst [2] : vector<4x16x16xf32> to vector<4x16xf32>
    %55 = vector.shape_cast %54 : vector<4x16xf32> to vector<4x16x1xf32>
    %cst_33 = arith.constant dense<0.000000e+00> : vector<4x1xf32>
    %56 = vector.multi_reduction <add>, %55, %cst_33 [1] : vector<4x16x1xf32> to vector<4x1xf32>
    %57 = vector.shape_cast %56 : vector<4x1xf32> to vector<4x1x1xf32>
    %58 = arith.mulf %50, %50 : vector<4x16x16xf32>
    %cst_34 = arith.constant dense<0.000000e+00> : vector<4x16xf32>
    %59 = vector.multi_reduction <add>, %58, %cst_34 [2] : vector<4x16x16xf32> to vector<4x16xf32>
    %60 = vector.shape_cast %59 : vector<4x16xf32> to vector<4x16x1xf32>
    %cst_35 = arith.constant dense<0.000000e+00> : vector<4x1xf32>
    %61 = vector.multi_reduction <add>, %60, %cst_35 [1] : vector<4x16x1xf32> to vector<4x1xf32>
    %62 = vector.shape_cast %61 : vector<4x1xf32> to vector<4x1x1xf32>
    %c0_i32_36 = arith.constant 0 : i32
    %63 = arith.cmpi eq, %arg1, %c0_i32_36 : i32
    %64 = arith.extui %63 : i1 to i32
    %c0_i32_37 = arith.constant 0 : i32
    %65 = arith.cmpi ne, %64, %c0_i32_37 : i32
    scf.if %65 {
      %cst_50 = arith.constant 0.000000e+00 : f32
      %72 = vector.broadcast %cst_50 : f32 to vector<4x1x2xf32>
      %c0_51 = arith.constant 0 : index
      %c0_52 = arith.constant 0 : index
      %c0_53 = arith.constant 0 : index
      %73 = vector.load %arg5[%c0_51, %c0_52, %c0_53] : memref<4x1x2xf32, #tpu.memory_space<vmem>>, vector<4x1x2xf32>
      tpu.vector_store %arg5[%c0_51, %c0_52, %c0_53], %72 {strides = array<i32>} : memref<4x1x2xf32, #tpu.memory_space<vmem>>, vector<4x1x2xf32>,
    } else {
    }
    %c0_38 = arith.constant 0 : index
    %c0_39 = arith.constant 0 : index
    %c0_40 = arith.constant 0 : index
    %66 = vector.load %arg5[%c0_38, %c0_39, %c0_40] : memref<4x1x2xf32, #tpu.memory_space<vmem>>, vector<4x1x1xf32>
    %67 = arith.addf %66, %57 : vector<4x1x1xf32>
    %c0_41 = arith.constant 0 : index
    %c0_42 = arith.constant 0 : index
    %c0_43 = arith.constant 0 : index
    %68 = vector.load %arg5[%c0_41, %c0_42, %c0_43] : memref<4x1x2xf32, #tpu.memory_space<vmem>>, vector<4x1x1xf32>
    tpu.vector_store %arg5[%c0_41, %c0_42, %c0_43], %67 {strides = array<i32>} : memref<4x1x2xf32, #tpu.memory_space<vmem>>, vector<4x1x1xf32>,
    %c0_44 = arith.constant 0 : index
    %c0_45 = arith.constant 0 : index
    %c1_46 = arith.constant 1 : index
    %69 = vector.load %arg5[%c0_44, %c0_45, %c1_46] : memref<4x1x2xf32, #tpu.memory_space<vmem>>, vector<4x1x1xf32>
    %70 = arith.addf %69, %62 : vector<4x1x1xf32>
    %c0_47 = arith.constant 0 : index
    %c0_48 = arith.constant 0 : index
    %c1_49 = arith.constant 1 : index
    %71 = vector.load %arg5[%c0_47, %c0_48, %c1_49] : memref<4x1x2xf32, #tpu.memory_space<vmem>>, vector<4x1x1xf32>
    tpu.vector_store %arg5[%c0_47, %c0_48, %c1_49], %70 {strides = array<i32>} : memref<4x1x2xf32, #tpu.memory_space<vmem>>, vector<4x1x1xf32>,
    return
  }
  func.func @transform_0(%arg0: i32, %arg1: i32) -> (i32, i32, i32, i32) {
    %c0_i32 = arith.constant 0 : i32
    %c0_i32_0 = arith.constant 0 : i32
    %c0_i32_1 = arith.constant 0 : i32
    return %arg1, %arg0, %c0_i32, %c0_i32_0 : i32, i32, i32, i32
  }
  func.func @transform_1(%arg0: i32, %arg1: i32) -> (i32, i32, i32) {
    %c0_i32 = arith.constant 0 : i32
    %c0_i32_0 = arith.constant 0 : i32
    %c0_i32_1 = arith.constant 0 : i32
    return %arg0, %c0_i32, %c0_i32_0 : i32, i32, i32
  }
  func.func @transform_2(%arg0: i32, %arg1: i32) -> (i32, i32, i32, i32) {
    %c0_i32 = arith.constant 0 : i32
    %c0_i32_0 = arith.constant 0 : i32
    %c0_i32_1 = arith.constant 0 : i32
    return %arg1, %arg0, %c0_i32, %c0_i32_0 : i32, i32, i32, i32
  }
  func.func @transform_3(%arg0: i32, %arg1: i32) -> (i32, i32, i32) {
    %c0_i32 = arith.constant 0 : i32
    %c0_i32_0 = arith.constant 0 : i32
    %c0_i32_1 = arith.constant 0 : i32
    return %arg0, %c0_i32, %c0_i32_0 : i32, i32, i32
  }
}

</mosaic_0001>

<llo_original>
// kernel: tpu_custom_call.1
$region0: #{tpu_custom_call.1}
  #allocation0 [shape = 'u32[]', space=smem, size = 0x4, offset = 0x4, fixed_abs, tag = 'smem constant byte address 0x4 - core index']
  #allocation1 [shape = 'u32[144,128]{1,0:T(1,128)}', space=vmem, size = 0x12000, scoped, tag = 'internal scratch']
  #allocation2 [shape = 'f32[4,18,18]{2,1,0:T(8,128)}', space=vmem, size = 0xc000, scoped, tag = 'scratch operand']
  %s0 = inlined_call_operand.hbm [shape: f32[2,4,16,16], index: 0, kind: input, shape index: {}]
  %s1 = inlined_call_operand.vmem [shape: f32[4,16,9], index: 1, kind: input, shape index: {}]
  %s2 = inlined_call_operand.hbm [shape: f32[2,4,16,16], index: 2, kind: output, shape index: {0}]
  %s3 = inlined_call_operand.vmem [shape: f32[4,1,2], index: 3, kind: output, shape index: {1}]
  %4 = xla_tuple %s2, %s3
  %s5 = sld [smem:[#allocation0]]
  $region61: #{tpu_custom_call.1} parent=0
    _
  %s7 = ssub.s32 1, %s5
  %s8 = scalar_select 0, %s7, %s5
  $region1: #{tpu_custom_call.1} parent=0
    #allocation3 [shape = 'u8[65536]{0}', space=vmem, size = 0x10000, scoped, tag = 'input window, operand 0']
    #allocation4 [shape = 's32[2]{0}', space=sflag, size = 0x8, scoped, tag = 'scoped memory for tpu_custom_call.1']
    #allocation5 [shape = 's32[2]{0}', space=sflag, size = 0x8, scoped, tag = 'scoped memory for tpu_custom_call.1']
    #allocation6 [shape = 'u8[65536]{0}', space=vmem, size = 0x10000, scoped, tag = 'output window, operand 0']
    %9 = vsyncpa [#allocation4], 0
    %s10 = scalar_lea.sflag [#allocation4], 1
    %11 = vsyncpa %s10, 0
    %12 = vsyncpa [#allocation5], 0
    %s13 = scalar_lea.sflag [#allocation5], 1
    %14 = vsyncpa %s13, 0
    loop: start=0, step=1, limit=4
    $region2: #{tpu_custom_call.1} parent=1 // loop_pre_header
      _
    $region3: #{tpu_custom_call.1} parent=1 // loop_header
      %s16 = sphi 0, %s20
      %p17 = scmp.ge.s32.totalorder %s16, 4
      %s23 = sphi 0, %s35
      %s24 = sphi 0, %s31
      %s25 = sphi 0, %s23
      %s26 = sphi 0, %s24
      %s27 = sphi 0, %s25
      %s28 = sphi 0, %s26
      %s40 = sphi 0, %s42
      %s43 = sphi 0, %s40
      %s44 = sphi 0, %s43
      %s60 = sphi 0, %s44
      %s66 = sphi 0, %s68
      %s69 = sphi 0, %s66
      %s70 = sphi 0, %s69
      %s86 = sphi 0, %s70
      %s94 = sphi 0, %s96
      %s97 = sphi 0, %s94
      %s98 = sphi 0, %s97
      %s114 = sphi 0, %s98
      %s120 = sphi 0, %s122
      %s123 = sphi 0, %s120
      %s124 = sphi 0, %s123
      %s140 = sphi 0, %s124
    $region4: #{tpu_custom_call.1} parent=1 // loop_header_branch
      %19 = sbr.rel (%p17) target = $region8
    $region5: #{tpu_custom_call.1} parent=1 // loop_body
      %s21 = ssub.s32 %s16, 1
      %s22 = ssub.s32 %s16, 2
      %s29 = sadd.s32 1, %s24
      %p30 = scmp.ge.s32.totalorder %s29, 2
      %s31 = scalar_select %p30, 0, %s29
      %s32 = sadd.s32 1, %s23
      %s33 = scalar_select %p30, %s32, %s23
      %p34 = scmp.ge.s32.totalorder %s33, 1
      %s35 = scalar_select %p34, 0, %s33
      %s36 = ssub.s32 %s24, %s31
      %s37 = ssub.s32 %s23, %s35
      %s38 = sor.u32 %s36, %s37
      %p39 = scmp.eq.s32.totalorder %s38, 0
      %s41 = sadd.s32 %s40, 1
      %s42 = scalar_select %p39, %s40, %s41
      %p45 = pneg %p39
      %p46 = scmp.eq.s32.totalorder %s16, 1
      %p47 = por %p45, %p46
      %p48 = scmp.ne.s32.totalorder %s40, %s43
      %p49 = scmp.eq.s32.totalorder %s16, 0
      %p50 = por %p48, %p49
      %p51 = scmp.ne.s32.totalorder %s40, %s43
      %p52 = scmp.eq.s32.totalorder %s21, 1
      %p53 = por %p51, %p52
      %p54 = scmp.ne.s32.totalorder %s43, %s44
      %p55 = scmp.eq.s32.totalorder %s21, 0
      %p56 = por %p54, %p55
      %p57 = scmp.ne.s32.totalorder %s43, %s44
      %p58 = scmp.eq.s32.totalorder %s22, 1
      %p59 = por %p57, %p58
      %p61 = scmp.ne.s32.totalorder %s44, %s60
      %p62 = scmp.eq.s32.totalorder %s22, 0
      %p63 = por %p61, %p62
      %s64 = ssub.s32 %s23, %s35
      %p65 = scmp.eq.s32.totalorder %s64, 0
      %s67 = sadd.s32 %s66, 1
      %s68 = scalar_select %p65, %s66, %s67
      %p71 = pneg %p65
      %p72 = scmp.eq.s32.totalorder %s16, 1
      %p73 = por %p71, %p72
      %p74 = scmp.ne.s32.totalorder %s66, %s69
      %p75 = scmp.eq.s32.totalorder %s16, 0
      %p76 = por %p74, %p75
      %p77 = scmp.ne.s32.totalorder %s66, %s69
      %p78 = scmp.eq.s32.totalorder %s21, 1
      %p79 = por %p77, %p78
      %p80 = scmp.ne.s32.totalorder %s69, %s70
      %p81 = scmp.eq.s32.totalorder %s21, 0
      %p82 = por %p80, %p81
      %p83 = scmp.ne.s32.totalorder %s69, %s70
      %p84 = scmp.eq.s32.totalorder %s22, 1
      %p85 = por %p83, %p84
      %p87 = scmp.ne.s32.totalorder %s70, %s86
      %p88 = scmp.eq.s32.totalorder %s22, 0
      %p89 = por %p87, %p88
      %s90 = ssub.s32 %s24, %s31
      %s91 = ssub.s32 %s23, %s35
      %s92 = sor.u32 %s90, %s91
      %p93 = scmp.eq.s32.totalorder %s92, 0
      %s95 = sadd.s32 %s94, 1
      %s96 = scalar_select %p93, %s94, %s95
      %p99 = pneg %p93
      %p100 = scmp.eq.s32.totalorder %s16, 1
      %p101 = por %p99, %p100
      %p102 = scmp.ne.s32.totalorder %s94, %s97
      %p103 = scmp.eq.s32.totalorder %s16, 0
      %p104 = por %p102, %p103
      %p105 = scmp.ne.s32.totalorder %s94, %s97
      %p106 = scmp.eq.s32.totalorder %s21, 1
      %p107 = por %p105, %p106
      %p108 = scmp.ne.s32.totalorder %s97, %s98
      %p109 = scmp.eq.s32.totalorder %s21, 0
      %p110 = por %p108, %p109
      %p111 = scmp.ne.s32.totalorder %s97, %s98
      %p112 = scmp.eq.s32.totalorder %s22, 1
      %p113 = por %p111, %p112
      %p115 = scmp.ne.s32.totalorder %s98, %s114
      %p116 = scmp.eq.s32.totalorder %s22, 0
      %p117 = por %p115, %p116
      %s118 = ssub.s32 %s23, %s35
      %p119 = scmp.eq.s32.totalorder %s118, 0
      %s121 = sadd.s32 %s120, 1
      %s122 = scalar_select %p119, %s120, %s121
      %p125 = pneg %p119
      %p126 = scmp.eq.s32.totalorder %s16, 1
      %p127 = por %p125, %p126
      %p128 = scmp.ne.s32.totalorder %s120, %s123
      %p129 = scmp.eq.s32.totalorder %s16, 0
      %p130 = por %p128, %p129
      %p131 = scmp.ne.s32.totalorder %s120, %s123
      %p132 = scmp.eq.s32.totalorder %s21, 1
      %p133 = por %p131, %p132
      %p134 = scmp.ne.s32.totalorder %s123, %s124
      %p135 = scmp.eq.s32.totalorder %s21, 0
      %p136 = por %p134, %p135
      %p137 = scmp.ne.s32.totalorder %s123, %s124
      %p138 = scmp.eq.s32.totalorder %s22, 1
      %p139 = por %p137, %p138
      %p141 = scmp.ne.s32.totalorder %s124, %s140
      %p142 = scmp.eq.s32.totalorder %s22, 0
      %p143 = por %p141, %p142
      %p144 = scmp.le.s32.totalorder 1, %s16
      %p145 = scmp.lt.s32.totalorder %s16, 3
      %p146 = pnand %p144, %p145
      %p147 = pneg %p146
      // Predicated region
      $region9: #{tpu_custom_call.1} parent=5 // pred_check
        _
      $region10: #{tpu_custom_call.1} parent=5 // pred_check_branch
        %149 = sbr.rel (%p146) target = $region12
      $region11: #{tpu_custom_call.1} parent=5 // pred_region
        %s150 = ssub.s32 %s16, 1
        // Predicated region
        $region13: #{tpu_custom_call.1} parent=11 // pred_check
          %p151 = pneg %p82
        $region14: #{tpu_custom_call.1} parent=11 // pred_check_branch
          %153 = sbr.rel (%p151) target = $region16
        $region15: #{tpu_custom_call.1} parent=11 // pred_region
          %s154 = smul.u32 4, %s25
          %p155 = scmp.lt.s32.totalorder %s154, 3
          %s156 = scalar_select %p155, %s154, 3
          %s157 = smul.addr %s156, 2
          %s158 = smul.addr %s157, 8
          %s159 = scalar_lea.vmem %s1, %s158
          %s160 = smul.u32 4, %s25
        $region16: #{tpu_custom_call.1} parent=11 // pred_fallthru
          _
      $region12: #{tpu_custom_call.1} parent=5 // pred_fallthru
        _
      %p161 = scmp.lt.s32.totalorder %s16, 2
      // Predicated region
      $region17: #{tpu_custom_call.1} parent=5 // pred_check
        %p162 = pneg %p161
      $region18: #{tpu_custom_call.1} parent=5 // pred_check_branch
        %164 = sbr.rel (%p162) target = $region20
      $region19: #{tpu_custom_call.1} parent=5 // pred_region
        // Predicated region
        $region21: #{tpu_custom_call.1} parent=19 // pred_check
          %p165 = pneg %p50
        $region22: #{tpu_custom_call.1} parent=19 // pred_check_branch
          %167 = sbr.rel (%p165) target = $region24
        $region23: #{tpu_custom_call.1} parent=19 // pred_region
          %s168 = sand.u32 %s40, 1
          %s169 = scalar_lea.sflag [#allocation4], %s168
          %s170 = sand.u32 %s40, 1
          %s171 = smul.addr %s170, 64
          %s172 = scalar_lea.vmem [#allocation3], %s171
          %s173 = smul.u32 4, %s23
          %s175 = ssub.s32 1024, 1024
          %176 = vsyncadd %s169, %s175
          %s177 = smul.addr %s173, 2
          %s178 = smul.addr %s24, 8
          %s179 = sadd.s32 %s177, %s178
          %s180 = smul.addr %s179, 128
          %s181 = scalar_lea.hbm %s0, %s180
          %s182 = sshll.u32 %s172, 4
          %s183 = int_to_ptr.vmem [resolvable:$true] %s182
          %188 = dma.hbm_to_vmem [thread:$0]  %s181, 1024, %s183, %s169, 128, 128, 8
        $region24: #{tpu_custom_call.1} parent=19 // pred_fallthru
          _
      $region20: #{tpu_custom_call.1} parent=5 // pred_fallthru
        _
      %p189 = scmp.le.s32.totalorder 1, %s16
      %p190 = scmp.lt.s32.totalorder %s16, 3
      %p191 = pnand %p189, %p190
      %p192 = pneg %p191
      // Predicated region
      $region25: #{tpu_custom_call.1} parent=5 // pred_check
        _
      $region26: #{tpu_custom_call.1} parent=5 // pred_check_branch
        %194 = sbr.rel (%p191) target = $region28
      $region27: #{tpu_custom_call.1} parent=5 // pred_region
        %s195 = ssub.s32 %s16, 1
        %s196 = sand.u32 %s43, 1
        %s197 = scalar_lea.sflag [#allocation4], %s196
        %s198 = sand.u32 %s43, 1
        %s199 = smul.addr %s198, 64
        %s200 = scalar_lea.vmem [#allocation3], %s199
        // Predicated region
        $region29: #{tpu_custom_call.1} parent=27 // pred_check
          %p201 = pneg %p56
        $region30: #{tpu_custom_call.1} parent=27 // pred_check_branch
          %203 = sbr.rel (%p201) target = $region32
        $region31: #{tpu_custom_call.1} parent=27 // pred_region
          %204 = dma.done %s197, 1024
        $region32: #{tpu_custom_call.1} parent=27 // pred_fallthru
          _
        %s205 = sand.u32 %s43, 1
        %s206 = scalar_lea.sflag [#allocation4], %s205
        %s207 = sand.u32 %s43, 1
        %s208 = smul.addr %s207, 64
        %s209 = scalar_lea.vmem [#allocation3], %s208
        %p210 = pneg %p56
        %p211 = pneg %p53
        %s212 = smul.u32 4, %s25
        %p213 = scmp.lt.s32.totalorder %s212, 3
        %s214 = scalar_select %p213, %s212, 3
        %s215 = smul.addr %s214, 2
        %s216 = smul.addr %s215, 8
        %s217 = scalar_lea.vmem %s1, %s216
        %p218 = pneg %p82
        %p219 = pneg %p79
        %p220 = pneg %p110
        %p221 = pneg %p107
        %s222 = sand.u32 %s97, 1
        %s223 = scalar_lea.sflag [#allocation5], %s222
        %s224 = sand.u32 %s97, 1
        %s225 = smul.addr %s224, 64
        %s226 = scalar_lea.vmem [#allocation6], %s225
        %p227 = pneg %p136
        %p228 = pneg %p133
        %s229 = smul.u32 4, %s25
        %p230 = scmp.lt.s32.totalorder %s229, 3
        %s231 = scalar_select %p230, %s229, 3
        %s232 = scalar_lea.vmem %s3, %s231
        %s233 = smul.u32 4, %s25
        %s234 = smul.u32 4, %s25
        %p235 = scmp.lt.s32.totalorder %s234, 3
        %s236 = scalar_select %p235, %s234, 3
        %s237 = smul.addr %s236, 2
        %s238 = smul.addr %s237, 8
        %s239 = scalar_lea.vmem %s1, %s238
        %s240 = smul.u32 4, %s25
        %s241 = smul.u32 4, %s25
        %s242 = smul.u32 4, %s25
        %p243 = scmp.lt.s32.totalorder %s242, 3
        %s244 = scalar_select %p243, %s242, 3
        %s245 = scalar_lea.vmem %s3, %s244
        %s246 = smul.u32 4, %s25
        %p247 = scmp.eq.s32.totalorder %s26, 0
        // Predicated region
        $region33: #{tpu_custom_call.1} parent=27 // pred_check
          %p248 = pneg %p247
        $region34: #{tpu_custom_call.1} parent=27 // pred_check_branch
          %250 = sbr.rel (%p248) target = $region36
        $region35: #{tpu_custom_call.1} parent=27 // pred_region
          %vm251 = vcmask 146432
          %252 = vst.msk [vmem:[#allocation2] sm:$0xff] %vm251, 0.0
          %253 = vst.msk [vmem:[#allocation2 + $0x8] sm:$0xff] %vm251, 0.0
          %vm254 = vcmask 140288
          %255 = vst.msk [vmem:[#allocation2 + $0x10] sm:$0x3] %vm254, 0.0
          %256 = vst.msk [vmem:[#allocation2 + $0x18] sm:$0xff] %vm251, 0.0
          %257 = vst.msk [vmem:[#allocation2 + $0x20] sm:$0xff] %vm251, 0.0
          %258 = vst.msk [vmem:[#allocation2 + $0x28] sm:$0x3] %vm254, 0.0
          %259 = vst.msk [vmem:[#allocation2 + $0x30] sm:$0xff] %vm251, 0.0
          %260 = vst.msk [vmem:[#allocation2 + $0x38] sm:$0xff] %vm251, 0.0
          %261 = vst.msk [vmem:[#allocation2 + $0x40] sm:$0x3] %vm254, 0.0
          %262 = vst.msk [vmem:[#allocation2 + $0x48] sm:$0xff] %vm251, 0.0
          %263 = vst.msk [vmem:[#allocation2 + $0x50] sm:$0xff] %vm251, 0.0
          %264 = vst.msk [vmem:[#allocation2 + $0x58] sm:$0x3] %vm254, 0.0
        $region36: #{tpu_custom_call.1} parent=27 // pred_fallthru
          _
        %v265 = vld [vmem:[%s200] sm:$0xff]
        %v266 = vld [vmem:[%s200 + $0x8] sm:$0xff]
        %v267 = vld [vmem:[%s200 + $0x10] sm:$0xff]
        %v268 = vld [vmem:[%s200 + $0x18] sm:$0xff]
        %v269 = vld [vmem:[%s200 + $0x20] sm:$0xff]
        %v270 = vld [vmem:[%s200 + $0x28] sm:$0xff]
        %v271 = vld [vmem:[%s200 + $0x30] sm:$0xff]
        %v272 = vld [vmem:[%s200 + $0x38] sm:$0xff]
        %281 = vrot.lane.b32.xlu0 %v265, 1
        %v282 = vpop.permute.xlu0 %281
        %283 = vrot.lane.b32.xlu0 %v266, 1
        %v284 = vpop.permute.xlu0 %283
        %285 = vrot.lane.b32.xlu0 %v267, 1
        %v286 = vpop.permute.xlu0 %285
        %287 = vrot.lane.b32.xlu0 %v268, 1
        %v288 = vpop.permute.xlu0 %287
        %289 = vrot.lane.b32.xlu0 %v269, 1
        %v290 = vpop.permute.xlu0 %289
        %291 = vrot.lane.b32.xlu0 %v270, 1
        %v292 = vpop.permute.xlu0 %291
        %293 = vrot.lane.b32.xlu0 %v271, 1
        %v294 = vpop.permute.xlu0 %293
        %295 = vrot.lane.b32.xlu0 %v272, 1
        %v296 = vpop.permute.xlu0 %295
        %vm305 = vcmask 138248
        %306 = vst.msk [vmem:[#allocation2 + $0x1] sm:$0xff] %vm305, %v282
        %307 = vst.msk [vmem:[#allocation2 + $0x9] sm:$0xff] %vm305, %v284
        %308 = vst.msk [vmem:[#allocation2 + $0x19] sm:$0xff] %vm305, %v286
        %309 = vst.msk [vmem:[#allocation2 + $0x21] sm:$0xff] %vm305, %v288
        %310 = vst.msk [vmem:[#allocation2 + $0x31] sm:$0xff] %vm305, %v290
        %311 = vst.msk [vmem:[#allocation2 + $0x39] sm:$0xff] %vm305, %v292
        %312 = vst.msk [vmem:[#allocation2 + $0x49] sm:$0xff] %vm305, %v294
        %313 = vst.msk [vmem:[#allocation2 + $0x51] sm:$0xff] %vm305, %v296
        %v314 = vld [vmem:[#allocation2] sm:$0xff]
        %v315 = vld [vmem:[#allocation2 + $0x8] sm:$0xff]
        %v316 = vld [vmem:[#allocation2 + $0x10] sm:$0x3]
        %v317 = vld [vmem:[#allocation2 + $0x18] sm:$0xff]
        %v318 = vld [vmem:[#allocation2 + $0x20] sm:$0xff]
        %v319 = vld [vmem:[#allocation2 + $0x28] sm:$0x3]
        %v320 = vld [vmem:[#allocation2 + $0x30] sm:$0xff]
        %v321 = vld [vmem:[#allocation2 + $0x38] sm:$0xff]
        %v322 = vld [vmem:[#allocation2 + $0x40] sm:$0x3]
        %v323 = vld [vmem:[#allocation2 + $0x48] sm:$0xff]
        %v324 = vld [vmem:[#allocation2 + $0x50] sm:$0xff]
        %v325 = vld [vmem:[#allocation2 + $0x58] sm:$0x3]
        %v326 = vld [vmem:[%s239] sm:$0xff]
        %v327 = vld [vmem:[%s239 + $0x8] sm:$0xff]
        %v328 = vld [vmem:[%s239 + $0x10] sm:$0xff]
        %v329 = vld [vmem:[%s239 + $0x18] sm:$0xff]
        %v330 = vld [vmem:[%s239 + $0x20] sm:$0xff]
        %v331 = vld [vmem:[%s239 + $0x28] sm:$0xff]
        %v332 = vld [vmem:[%s239 + $0x30] sm:$0xff]
        %v333 = vld [vmem:[%s239 + $0x38] sm:$0xff]
        %335 = vset.pattern.permute.xlu0 0
        %336 = vperm.xlu0 %335, %v326
        %v337 = vpop.permute.xlu0 %336
        %340 = vset.pattern.permute.xlu0 0
        %341 = vperm.xlu0 %340, %v327
        %v342 = vpop.permute.xlu0 %341
        %345 = vset.pattern.permute.xlu0 0
        %346 = vperm.xlu0 %345, %v328
        %v347 = vpop.permute.xlu0 %346
        %350 = vset.pattern.permute.xlu0 0
        %351 = vperm.xlu0 %350, %v329
        %v352 = vpop.permute.xlu0 %351
        %355 = vset.pattern.permute.xlu0 0
        %356 = vperm.xlu0 %355, %v330
        %v357 = vpop.permute.xlu0 %356
        %360 = vset.pattern.permute.xlu0 0
        %361 = vperm.xlu0 %360, %v331
        %v362 = vpop.permute.xlu0 %361
        %365 = vset.pattern.permute.xlu0 0
        %366 = vperm.xlu0 %365, %v332
        %v367 = vpop.permute.xlu0 %366
        %370 = vset.pattern.permute.xlu0 0
        %371 = vperm.xlu0 %370, %v333
        %v372 = vpop.permute.xlu0 %371
        %v374 = vmul.f32 %v314, %v337
        %v375 = vmul.f32 %v315, %v342
        %v376 = vmul.f32 %v317, %v347
        %v377 = vmul.f32 %v318, %v352
        %v378 = vmul.f32 %v320, %v357
        %v379 = vmul.f32 %v321, %v362
        %v380 = vmul.f32 %v323, %v367
        %v381 = vmul.f32 %v324, %v372
        %382 = vset.pattern.permute.xlu0 1
        %383 = vperm.xlu0 %382, %v326
        %v384 = vpop.permute.xlu0 %383
        %386 = vset.pattern.permute.xlu0 1
        %387 = vperm.xlu0 %386, %v327
        %v388 = vpop.permute.xlu0 %387
        %390 = vset.pattern.permute.xlu0 1
        %391 = vperm.xlu0 %390, %v328
        %v392 = vpop.permute.xlu0 %391
        %394 = vset.pattern.permute.xlu0 1
        %395 = vperm.xlu0 %394, %v329
        %v396 = vpop.permute.xlu0 %395
        %398 = vset.pattern.permute.xlu0 1
        %399 = vperm.xlu0 %398, %v330
        %v400 = vpop.permute.xlu0 %399
        %402 = vset.pattern.permute.xlu0 1
        %403 = vperm.xlu0 %402, %v331
        %v404 = vpop.permute.xlu0 %403
        %406 = vset.pattern.permute.xlu0 1
        %407 = vperm.xlu0 %406, %v332
        %v408 = vpop.permute.xlu0 %407
        %410 = vset.pattern.permute.xlu0 1
        %411 = vperm.xlu0 %410, %v333
        %v412 = vpop.permute.xlu0 %411
        %v414 = vmul.f32 %v314, %v384
        %v415 = vmul.f32 %v315, %v388
        %v416 = vmul.f32 %v317, %v392
        %v417 = vmul.f32 %v318, %v396
        %v418 = vmul.f32 %v320, %v400
        %v419 = vmul.f32 %v321, %v404
        %v420 = vmul.f32 %v323, %v408
        %v421 = vmul.f32 %v324, %v412
        %430 = vrot.lane.b32.xlu0 %v414, 127
        %v431 = vpop.permute.xlu0 %430
        %432 = vrot.lane.b32.xlu0 %v415, 127
        %v433 = vpop.permute.xlu0 %432
        %434 = vrot.lane.b32.xlu0 %v416, 127
        %v435 = vpop.permute.xlu0 %434
        %436 = vrot.lane.b32.xlu0 %v417, 127
        %v437 = vpop.permute.xlu0 %436
        %438 = vrot.lane.b32.xlu0 %v418, 127
        %v439 = vpop.permute.xlu0 %438
        %440 = vrot.lane.b32.xlu0 %v419, 127
        %v441 = vpop.permute.xlu0 %440
        %442 = vrot.lane.b32.xlu0 %v420, 127
        %v443 = vpop.permute.xlu0 %442
        %444 = vrot.lane.b32.xlu0 %v421, 127
        %v445 = vpop.permute.xlu0 %444
        %v454 = vadd.f32 %v374, %v431
        %v455 = vadd.f32 %v375, %v433
        %v456 = vadd.f32 %v376, %v435
        %v457 = vadd.f32 %v377, %v437
        %v458 = vadd.f32 %v378, %v439
        %v459 = vadd.f32 %v379, %v441
        %v460 = vadd.f32 %v380, %v443
        %v461 = vadd.f32 %v381, %v445
        %462 = vset.pattern.permute.xlu0 2
        %463 = vperm.xlu0 %462, %v326
        %v464 = vpop.permute.xlu0 %463
        %466 = vset.pattern.permute.xlu0 2
        %467 = vperm.xlu0 %466, %v327
        %v468 = vpop.permute.xlu0 %467
        %470 = vset.pattern.permute.xlu0 2
        %471 = vperm.xlu0 %470, %v328
        %v472 = vpop.permute.xlu0 %471
        %474 = vset.pattern.permute.xlu0 2
        %475 = vperm.xlu0 %474, %v329
        %v476 = vpop.permute.xlu0 %475
        %478 = vset.pattern.permute.xlu0 2
        %479 = vperm.xlu0 %478, %v330
        %v480 = vpop.permute.xlu0 %479
        %482 = vset.pattern.permute.xlu0 2
        %483 = vperm.xlu0 %482, %v331
        %v484 = vpop.permute.xlu0 %483
        %486 = vset.pattern.permute.xlu0 2
        %487 = vperm.xlu0 %486, %v332
        %v488 = vpop.permute.xlu0 %487
        %490 = vset.pattern.permute.xlu0 2
        %491 = vperm.xlu0 %490, %v333
        %v492 = vpop.permute.xlu0 %491
        %v494 = vmul.f32 %v314, %v464
        %v495 = vmul.f32 %v315, %v468
        %v496 = vmul.f32 %v317, %v472
        %v497 = vmul.f32 %v318, %v476
        %v498 = vmul.f32 %v320, %v480
        %v499 = vmul.f32 %v321, %v484
        %v500 = vmul.f32 %v323, %v488
        %v501 = vmul.f32 %v324, %v492
        %510 = vrot.lane.b32.xlu0 %v494, 126
        %v511 = vpop.permute.xlu0 %510
        %512 = vrot.lane.b32.xlu0 %v495, 126
        %v513 = vpop.permute.xlu0 %512
        %514 = vrot.lane.b32.xlu0 %v496, 126
        %v515 = vpop.permute.xlu0 %514
        %516 = vrot.lane.b32.xlu0 %v497, 126
        %v517 = vpop.permute.xlu0 %516
        %518 = vrot.lane.b32.xlu0 %v498, 126
        %v519 = vpop.permute.xlu0 %518
        %520 = vrot.lane.b32.xlu0 %v499, 126
        %v521 = vpop.permute.xlu0 %520
        %522 = vrot.lane.b32.xlu0 %v500, 126
        %v523 = vpop.permute.xlu0 %522
        %524 = vrot.lane.b32.xlu0 %v501, 126
        %v525 = vpop.permute.xlu0 %524
        %v534 = vadd.f32 %v454, %v511
        %v535 = vadd.f32 %v455, %v513
        %v536 = vadd.f32 %v456, %v515
        %v537 = vadd.f32 %v457, %v517
        %v538 = vadd.f32 %v458, %v519
        %v539 = vadd.f32 %v459, %v521
        %v540 = vadd.f32 %v460, %v523
        %v541 = vadd.f32 %v461, %v525
        %542 = vset.pattern.permute.xlu0 3
        %543 = vperm.xlu0 %542, %v326
        %v544 = vpop.permute.xlu0 %543
        %545 = vset.pattern.permute.xlu0 3
        %546 = vperm.xlu0 %545, %v327
        %v547 = vpop.permute.xlu0 %546
        %548 = vset.pattern.permute.xlu0 3
        %549 = vperm.xlu0 %548, %v328
        %v550 = vpop.permute.xlu0 %549
        %551 = vset.pattern.permute.xlu0 3
        %552 = vperm.xlu0 %551, %v329
        %v553 = vpop.permute.xlu0 %552
        %554 = vset.pattern.permute.xlu0 3
        %555 = vperm.xlu0 %554, %v330
        %v556 = vpop.permute.xlu0 %555
        %557 = vset.pattern.permute.xlu0 3
        %558 = vperm.xlu0 %557, %v331
        %v559 = vpop.permute.xlu0 %558
        %560 = vset.pattern.permute.xlu0 3
        %561 = vperm.xlu0 %560, %v332
        %v562 = vpop.permute.xlu0 %561
        %563 = vset.pattern.permute.xlu0 3
        %564 = vperm.xlu0 %563, %v333
        %v565 = vpop.permute.xlu0 %564
        %vm566 = vcmask 1040384
        %v567 = vrot.slane %v544, 7
        %v568 = vrot.slane %v547, 7
        %v569 = vsel %vm566, %v567, %v568
        %v570 = vrot.slane %v550, 7
        %v571 = vrot.slane %v553, 7
        %v572 = vsel %vm566, %v570, %v571
        %v573 = vrot.slane %v556, 7
        %v574 = vrot.slane %v559, 7
        %v575 = vsel %vm566, %v573, %v574
        %v576 = vrot.slane %v562, 7
        %v577 = vrot.slane %v565, 7
        %v578 = vsel %vm566, %v576, %v577
        %v591 = vmul.f32 %v314, %v567
        %v592 = vmul.f32 %v315, %v569
        %v593 = vmul.f32 %v316, %v568
        %v594 = vmul.f32 %v317, %v570
        %v595 = vmul.f32 %v318, %v572
        %v596 = vmul.f32 %v319, %v571
        %v597 = vmul.f32 %v320, %v573
        %v598 = vmul.f32 %v321, %v575
        %v599 = vmul.f32 %v322, %v574
        %v600 = vmul.f32 %v323, %v576
        %v601 = vmul.f32 %v324, %v578
        %v602 = vmul.f32 %v325, %v577
        %vm615 = vcmask 1046528
        %v616 = vrot.slane %v591, 1
        %v617 = vrot.slane %v592, 1
        %v618 = vsel %vm615, %v616, %v617
        %v619 = vrot.slane %v593, 1
        %v620 = vsel %vm615, %v617, %v619
        %v621 = vrot.slane %v594, 1
        %v622 = vrot.slane %v595, 1
        %v623 = vsel %vm615, %v621, %v622
        %v624 = vrot.slane %v596, 1
        %v625 = vsel %vm615, %v622, %v624
        %v626 = vrot.slane %v597, 1
        %v627 = vrot.slane %v598, 1
        %v628 = vsel %vm615, %v626, %v627
        %v629 = vrot.slane %v599, 1
        %v630 = vsel %vm615, %v627, %v629
        %v631 = vrot.slane %v600, 1
        %v632 = vrot.slane %v601, 1
        %v633 = vsel %vm615, %v631, %v632
        %v634 = vrot.slane %v602, 1
        %v635 = vsel %vm615, %v632, %v634
        %v644 = vadd.f32 %v534, %v618
        %v645 = vadd.f32 %v535, %v620
        %v646 = vadd.f32 %v536, %v623
        %v647 = vadd.f32 %v537, %v625
        %v648 = vadd.f32 %v538, %v628
        %v649 = vadd.f32 %v539, %v630
        %v650 = vadd.f32 %v540, %v633
        %v651 = vadd.f32 %v541, %v635
        %652 = vset.pattern.permute.xlu0 4
        %653 = vperm.xlu0 %652, %v326
        %v654 = vpop.permute.xlu0 %653
        %655 = vset.pattern.permute.xlu0 4
        %656 = vperm.xlu0 %655, %v327
        %v657 = vpop.permute.xlu0 %656
        %658 = vset.pattern.permute.xlu0 4
        %659 = vperm.xlu0 %658, %v328
        %v660 = vpop.permute.xlu0 %659
        %661 = vset.pattern.permute.xlu0 4
        %662 = vperm.xlu0 %661, %v329
        %v663 = vpop.permute.xlu0 %662
        %664 = vset.pattern.permute.xlu0 4
        %665 = vperm.xlu0 %664, %v330
        %v666 = vpop.permute.xlu0 %665
        %667 = vset.pattern.permute.xlu0 4
        %668 = vperm.xlu0 %667, %v331
        %v669 = vpop.permute.xlu0 %668
        %670 = vset.pattern.permute.xlu0 4
        %671 = vperm.xlu0 %670, %v332
        %v672 = vpop.permute.xlu0 %671
        %673 = vset.pattern.permute.xlu0 4
        %674 = vperm.xlu0 %673, %v333
        %v675 = vpop.permute.xlu0 %674
        %v676 = vrot.slane %v654, 7
        %v677 = vrot.slane %v657, 7
        %v678 = vsel %vm566, %v676, %v677
        %v679 = vrot.slane %v660, 7
        %v680 = vrot.slane %v663, 7
        %v681 = vsel %vm566, %v679, %v680
        %v682 = vrot.slane %v666, 7
        %v683 = vrot.slane %v669, 7
        %v684 = vsel %vm566, %v682, %v683
        %v685 = vrot.slane %v672, 7
        %v686 = vrot.slane %v675, 7
        %v687 = vsel %vm566, %v685, %v686
        %v700 = vmul.f32 %v314, %v676
        %v701 = vmul.f32 %v315, %v678
        %v702 = vmul.f32 %v316, %v677
        %v703 = vmul.f32 %v317, %v679
        %v704 = vmul.f32 %v318, %v681
        %v705 = vmul.f32 %v319, %v680
        %v706 = vmul.f32 %v320, %v682
        %v707 = vmul.f32 %v321, %v684
        %v708 = vmul.f32 %v322, %v683
        %v709 = vmul.f32 %v323, %v685
        %v710 = vmul.f32 %v324, %v687
        %v711 = vmul.f32 %v325, %v686
        %v724 = vrot.slane %v700, 1
        %v725 = vrot.slane %v701, 1
        %v726 = vsel %vm615, %v724, %v725
        %v727 = vrot.slane %v702, 1
        %v728 = vsel %vm615, %v725, %v727
        %v729 = vrot.slane %v703, 1
        %v730 = vrot.slane %v704, 1
        %v731 = vsel %vm615, %v729, %v730
        %v732 = vrot.slane %v705, 1
        %v733 = vsel %vm615, %v730, %v732
        %v734 = vrot.slane %v706, 1
        %v735 = vrot.slane %v707, 1
        %v736 = vsel %vm615, %v734, %v735
        %v737 = vrot.slane %v708, 1
        %v738 = vsel %vm615, %v735, %v737
        %v739 = vrot.slane %v709, 1
        %v740 = vrot.slane %v710, 1
        %v741 = vsel %vm615, %v739, %v740
        %v742 = vrot.slane %v711, 1
        %v743 = vsel %vm615, %v740, %v742
        %744 = vrot.lane.b32.xlu0 %v726, 127
        %v745 = vpop.permute.xlu0 %744
        %746 = vrot.lane.b32.xlu0 %v728, 127
        %v747 = vpop.permute.xlu0 %746
        %748 = vrot.lane.b32.xlu0 %v731, 127
        %v749 = vpop.permute.xlu0 %748
        %750 = vrot.lane.b32.xlu0 %v733, 127
        %v751 = vpop.permute.xlu0 %750
        %752 = vrot.lane.b32.xlu0 %v736, 127
        %v753 = vpop.permute.xlu0 %752
        %754 = vrot.lane.b32.xlu0 %v738, 127
        %v755 = vpop.permute.xlu0 %754
        %756 = vrot.lane.b32.xlu0 %v741, 127
        %v757 = vpop.permute.xlu0 %756
        %758 = vrot.lane.b32.xlu0 %v743, 127
        %v759 = vpop.permute.xlu0 %758
        %v768 = vadd.f32 %v644, %v745
        %v769 = vadd.f32 %v645, %v747
        %v770 = vadd.f32 %v646, %v749
        %v771 = vadd.f32 %v647, %v751
        %v772 = vadd.f32 %v648, %v753
        %v773 = vadd.f32 %v649, %v755
        %v774 = vadd.f32 %v650, %v757
        %v775 = vadd.f32 %v651, %v759
        %776 = vset.pattern.permute.xlu0 5
        %777 = vperm.xlu0 %776, %v326
        %v778 = vpop.permute.xlu0 %777
        %779 = vset.pattern.permute.xlu0 5
        %780 = vperm.xlu0 %779, %v327
        %v781 = vpop.permute.xlu0 %780
        %782 = vset.pattern.permute.xlu0 5
        %783 = vperm.xlu0 %782, %v328
        %v784 = vpop.permute.xlu0 %783
        %785 = vset.pattern.permute.xlu0 5
        %786 = vperm.xlu0 %785, %v329
        %v787 = vpop.permute.xlu0 %786
        %788 = vset.pattern.permute.xlu0 5
        %789 = vperm.xlu0 %788, %v330
        %v790 = vpop.permute.xlu0 %789
        %791 = vset.pattern.permute.xlu0 5
        %792 = vperm.xlu0 %791, %v331
        %v793 = vpop.permute.xlu0 %792
        %794 = vset.pattern.permute.xlu0 5
        %795 = vperm.xlu0 %794, %v332
        %v796 = vpop.permute.xlu0 %795
        %797 = vset.pattern.permute.xlu0 5
        %798 = vperm.xlu0 %797, %v333
        %v799 = vpop.permute.xlu0 %798
        %v800 = vrot.slane %v778, 7
        %v801 = vrot.slane %v781, 7
        %v802 = vsel %vm566, %v800, %v801
        %v803 = vrot.slane %v784, 7
        %v804 = vrot.slane %v787, 7
        %v805 = vsel %vm566, %v803, %v804
        %v806 = vrot.slane %v790, 7
        %v807 = vrot.slane %v793, 7
        %v808 = vsel %vm566, %v806, %v807
        %v809 = vrot.slane %v796, 7
        %v810 = vrot.slane %v799, 7
        %v811 = vsel %vm566, %v809, %v810
        %v824 = vmul.f32 %v314, %v800
        %v825 = vmul.f32 %v315, %v802
        %v826 = vmul.f32 %v316, %v801
        %v827 = vmul.f32 %v317, %v803
        %v828 = vmul.f32 %v318, %v805
        %v829 = vmul.f32 %v319, %v804
        %v830 = vmul.f32 %v320, %v806
        %v831 = vmul.f32 %v321, %v808
        %v832 = vmul.f32 %v322, %v807
        %v833 = vmul.f32 %v323, %v809
        %v834 = vmul.f32 %v324, %v811
        %v835 = vmul.f32 %v325, %v810
        %v848 = vrot.slane %v824, 1
        %v849 = vrot.slane %v825, 1
        %v850 = vsel %vm615, %v848, %v849
        %v851 = vrot.slane %v826, 1
        %v852 = vsel %vm615, %v849, %v851
        %v853 = vrot.slane %v827, 1
        %v854 = vrot.slane %v828, 1
        %v855 = vsel %vm615, %v853, %v854
        %v856 = vrot.slane %v829, 1
        %v857 = vsel %vm615, %v854, %v856
        %v858 = vrot.slane %v830, 1
        %v859 = vrot.slane %v831, 1
        %v860 = vsel %vm615, %v858, %v859
        %v861 = vrot.slane %v832, 1
        %v862 = vsel %vm615, %v859, %v861
        %v863 = vrot.slane %v833, 1
        %v864 = vrot.slane %v834, 1
        %v865 = vsel %vm615, %v863, %v864
        %v866 = vrot.slane %v835, 1
        %v867 = vsel %vm615, %v864, %v866
        %868 = vrot.lane.b32.xlu0 %v850, 126
        %v869 = vpop.permute.xlu0 %868
        %870 = vrot.lane.b32.xlu0 %v852, 126
        %v871 = vpop.permute.xlu0 %870
        %872 = vrot.lane.b32.xlu0 %v855, 126
        %v873 = vpop.permute.xlu0 %872
        %874 = vrot.lane.b32.xlu0 %v857, 126
        %v875 = vpop.permute.xlu0 %874
        %876 = vrot.lane.b32.xlu0 %v860, 126
        %v877 = vpop.permute.xlu0 %876
        %878 = vrot.lane.b32.xlu0 %v862, 126
        %v879 = vpop.permute.xlu0 %878
        %880 = vrot.lane.b32.xlu0 %v865, 126
        %v881 = vpop.permute.xlu0 %880
        %882 = vrot.lane.b32.xlu0 %v867, 126
        %v883 = vpop.permute.xlu0 %882
        %v892 = vadd.f32 %v768, %v869
        %v893 = vadd.f32 %v769, %v871
        %v894 = vadd.f32 %v770, %v873
        %v895 = vadd.f32 %v771, %v875
        %v896 = vadd.f32 %v772, %v877
        %v897 = vadd.f32 %v773, %v879
        %v898 = vadd.f32 %v774, %v881
        %v899 = vadd.f32 %v775, %v883
        %900 = vset.pattern.permute.xlu0 6
        %901 = vperm.xlu0 %900, %v326
        %v902 = vpop.permute.xlu0 %901
        %903 = vset.pattern.permute.xlu0 6
        %904 = vperm.xlu0 %903, %v327
        %v905 = vpop.permute.xlu0 %904
        %906 = vset.pattern.permute.xlu0 6
        %907 = vperm.xlu0 %906, %v328
        %v908 = vpop.permute.xlu0 %907
        %909 = vset.pattern.permute.xlu0 6
        %910 = vperm.xlu0 %909, %v329
        %v911 = vpop.permute.xlu0 %910
        %912 = vset.pattern.permute.xlu0 6
        %913 = vperm.xlu0 %912, %v330
        %v914 = vpop.permute.xlu0 %913
        %915 = vset.pattern.permute.xlu0 6
        %916 = vperm.xlu0 %915, %v331
        %v917 = vpop.permute.xlu0 %916
        %918 = vset.pattern.permute.xlu0 6
        %919 = vperm.xlu0 %918, %v332
        %v920 = vpop.permute.xlu0 %919
        %921 = vset.pattern.permute.xlu0 6
        %922 = vperm.xlu0 %921, %v333
        %v923 = vpop.permute.xlu0 %922
        %vm924 = vcmask 1041408
        %v925 = vrot.slane %v902, 6
        %v926 = vrot.slane %v905, 6
        %v927 = vsel %vm924, %v925, %v926
        %v928 = vrot.slane %v908, 6
        %v929 = vrot.slane %v911, 6
        %v930 = vsel %vm924, %v928, %v929
        %v931 = vrot.slane %v914, 6
        %v932 = vrot.slane %v917, 6
        %v933 = vsel %vm924, %v931, %v932
        %v934 = vrot.slane %v920, 6
        %v935 = vrot.slane %v923, 6
        %v936 = vsel %vm924, %v934, %v935
        %v949 = vmul.f32 %v314, %v925
        %v950 = vmul.f32 %v315, %v927
        %v951 = vmul.f32 %v316, %v926
        %v952 = vmul.f32 %v317, %v928
        %v953 = vmul.f32 %v318, %v930
        %v954 = vmul.f32 %v319, %v929
        %v955 = vmul.f32 %v320, %v931
        %v956 = vmul.f32 %v321, %v933
        %v957 = vmul.f32 %v322, %v932
        %v958 = vmul.f32 %v323, %v934
        %v959 = vmul.f32 %v324, %v936
        %v960 = vmul.f32 %v325, %v935
        %vm973 = vcmask 1045504
        %v974 = vrot.slane %v949, 2
        %v975 = vrot.slane %v950, 2
        %v976 = vsel %vm973, %v974, %v975
        %v977 = vrot.slane %v951, 2
        %v978 = vsel %vm973, %v975, %v977
        %v979 = vrot.slane %v952, 2
        %v980 = vrot.slane %v953, 2
        %v981 = vsel %vm973, %v979, %v980
        %v982 = vrot.slane %v954, 2
        %v983 = vsel %vm973, %v980, %v982
        %v984 = vrot.slane %v955, 2
        %v985 = vrot.slane %v956, 2
        %v986 = vsel %vm973, %v984, %v985
        %v987 = vrot.slane %v957, 2
        %v988 = vsel %vm973, %v985, %v987
        %v989 = vrot.slane %v958, 2
        %v990 = vrot.slane %v959, 2
        %v991 = vsel %vm973, %v989, %v990
        %v992 = vrot.slane %v960, 2
        %v993 = vsel %vm973, %v990, %v992
        %v1002 = vadd.f32 %v892, %v976
        %v1003 = vadd.f32 %v893, %v978
        %v1004 = vadd.f32 %v894, %v981
        %v1005 = vadd.f32 %v895, %v983
        %v1006 = vadd.f32 %v896, %v986
        %v1007 = vadd.f32 %v897, %v988
        %v1008 = vadd.f32 %v898, %v991
        %v1009 = vadd.f32 %v899, %v993
        %1010 = vset.pattern.permute.xlu0 7
        %1011 = vperm.xlu0 %1010, %v326
        %v1012 = vpop.permute.xlu0 %1011
        %1013 = vset.pattern.permute.xlu0 7
        %1014 = vperm.xlu0 %1013, %v327
        %v1015 = vpop.permute.xlu0 %1014
        %1016 = vset.pattern.permute.xlu0 7
        %1017 = vperm.xlu0 %1016, %v328
        %v1018 = vpop.permute.xlu0 %1017
        %1019 = vset.pattern.permute.xlu0 7
        %1020 = vperm.xlu0 %1019, %v329
        %v1021 = vpop.permute.xlu0 %1020
        %1022 = vset.pattern.permute.xlu0 7
        %1023 = vperm.xlu0 %1022, %v330
        %v1024 = vpop.permute.xlu0 %1023
        %1025 = vset.pattern.permute.xlu0 7
        %1026 = vperm.xlu0 %1025, %v331
        %v1027 = vpop.permute.xlu0 %1026
        %1028 = vset.pattern.permute.xlu0 7
        %1029 = vperm.xlu0 %1028, %v332
        %v1030 = vpop.permute.xlu0 %1029
        %1031 = vset.pattern.permute.xlu0 7
        %1032 = vperm.xlu0 %1031, %v333
        %v1033 = vpop.permute.xlu0 %1032
        %v1034 = vrot.slane %v1012, 6
        %v1035 = vrot.slane %v1015, 6
        %v1036 = vsel %vm924, %v1034, %v1035
        %v1037 = vrot.slane %v1018, 6
        %v1038 = vrot.slane %v1021, 6
        %v1039 = vsel %vm924, %v1037, %v1038
        %v1040 = vrot.slane %v1024, 6
        %v1041 = vrot.slane %v1027, 6
        %v1042 = vsel %vm924, %v1040, %v1041
        %v1043 = vrot.slane %v1030, 6
        %v1044 = vrot.slane %v1033, 6
        %v1045 = vsel %vm924, %v1043, %v1044
        %v1058 = vmul.f32 %v314, %v1034
        %v1059 = vmul.f32 %v315, %v1036
        %v1060 = vmul.f32 %v316, %v1035
        %v1061 = vmul.f32 %v317, %v1037
        %v1062 = vmul.f32 %v318, %v1039
        %v1063 = vmul.f32 %v319, %v1038
        %v1064 = vmul.f32 %v320, %v1040
        %v1065 = vmul.f32 %v321, %v1042
        %v1066 = vmul.f32 %v322, %v1041
        %v1067 = vmul.f32 %v323, %v1043
        %v1068 = vmul.f32 %v324, %v1045
        %v1069 = vmul.f32 %v325, %v1044
        %v1082 = vrot.slane %v1058, 2
        %v1083 = vrot.slane %v1059, 2
        %v1084 = vsel %vm973, %v1082, %v1083
        %v1085 = vrot.slane %v1060, 2
        %v1086 = vsel %vm973, %v1083, %v1085
        %v1087 = vrot.slane %v1061, 2
        %v1088 = vrot.slane %v1062, 2
        %v1089 = vsel %vm973, %v1087, %v1088
        %v1090 = vrot.slane %v1063, 2
        %v1091 = vsel %vm973, %v1088, %v1090
        %v1092 = vrot.slane %v1064, 2
        %v1093 = vrot.slane %v1065, 2
        %v1094 = vsel %vm973, %v1092, %v1093
        %v1095 = vrot.slane %v1066, 2
        %v1096 = vsel %vm973, %v1093, %v1095
        %v1097 = vrot.slane %v1067, 2
        %v1098 = vrot.slane %v1068, 2
        %v1099 = vsel %vm973, %v1097, %v1098
        %v1100 = vrot.slane %v1069, 2
        %v1101 = vsel %vm973, %v1098, %v1100
        %1102 = vrot.lane.b32.xlu0 %v1084, 127
        %v1103 = vpop.permute.xlu0 %1102
        %1104 = vrot.lane.b32.xlu0 %v1086, 127
        %v1105 = vpop.permute.xlu0 %1104
        %1106 = vrot.lane.b32.xlu0 %v1089, 127
        %v1107 = vpop.permute.xlu0 %1106
        %1108 = vrot.lane.b32.xlu0 %v1091, 127
        %v1109 = vpop.permute.xlu0 %1108
        %1110 = vrot.lane.b32.xlu0 %v1094, 127
        %v1111 = vpop.permute.xlu0 %1110
        %1112 = vrot.lane.b32.xlu0 %v1096, 127
        %v1113 = vpop.permute.xlu0 %1112
        %1114 = vrot.lane.b32.xlu0 %v1099, 127
        %v1115 = vpop.permute.xlu0 %1114
        %1116 = vrot.lane.b32.xlu0 %v1101, 127
        %v1117 = vpop.permute.xlu0 %1116
        %v1126 = vadd.f32 %v1002, %v1103
        %v1127 = vadd.f32 %v1003, %v1105
        %v1128 = vadd.f32 %v1004, %v1107
        %v1129 = vadd.f32 %v1005, %v1109
        %v1130 = vadd.f32 %v1006, %v1111
        %v1131 = vadd.f32 %v1007, %v1113
        %v1132 = vadd.f32 %v1008, %v1115
        %v1133 = vadd.f32 %v1009, %v1117
        %1134 = vset.pattern.permute.xlu0 8
        %1135 = vperm.xlu0 %1134, %v326
        %v1136 = vpop.permute.xlu0 %1135
        %1137 = vset.pattern.permute.xlu0 8
        %1138 = vperm.xlu0 %1137, %v327
        %v1139 = vpop.permute.xlu0 %1138
        %1140 = vset.pattern.permute.xlu0 8
        %1141 = vperm.xlu0 %1140, %v328
        %v1142 = vpop.permute.xlu0 %1141
        %1143 = vset.pattern.permute.xlu0 8
        %1144 = vperm.xlu0 %1143, %v329
        %v1145 = vpop.permute.xlu0 %1144
        %1146 = vset.pattern.permute.xlu0 8
        %1147 = vperm.xlu0 %1146, %v330
        %v1148 = vpop.permute.xlu0 %1147
        %1149 = vset.pattern.permute.xlu0 8
        %1150 = vperm.xlu0 %1149, %v331
        %v1151 = vpop.permute.xlu0 %1150
        %1152 = vset.pattern.permute.xlu0 8
        %1153 = vperm.xlu0 %1152, %v332
        %v1154 = vpop.permute.xlu0 %1153
        %1155 = vset.pattern.permute.xlu0 8
        %1156 = vperm.xlu0 %1155, %v333
        %v1157 = vpop.permute.xlu0 %1156
        %v1158 = vrot.slane %v1136, 6
        %v1159 = vrot.slane %v1139, 6
        %v1160 = vsel %vm924, %v1158, %v1159
        %v1161 = vrot.slane %v1142, 6
        %v1162 = vrot.slane %v1145, 6
        %v1163 = vsel %vm924, %v1161, %v1162
        %v1164 = vrot.slane %v1148, 6
        %v1165 = vrot.slane %v1151, 6
        %v1166 = vsel %vm924, %v1164, %v1165
        %v1167 = vrot.slane %v1154, 6
        %v1168 = vrot.slane %v1157, 6
        %v1169 = vsel %vm924, %v1167, %v1168
        %v1182 = vmul.f32 %v314, %v1158
        %v1183 = vmul.f32 %v315, %v1160
        %v1184 = vmul.f32 %v316, %v1159
        %v1185 = vmul.f32 %v317, %v1161
        %v1186 = vmul.f32 %v318, %v1163
        %v1187 = vmul.f32 %v319, %v1162
        %v1188 = vmul.f32 %v320, %v1164
        %v1189 = vmul.f32 %v321, %v1166
        %v1190 = vmul.f32 %v322, %v1165
        %v1191 = vmul.f32 %v323, %v1167
        %v1192 = vmul.f32 %v324, %v1169
        %v1193 = vmul.f32 %v325, %v1168
        %v1206 = vrot.slane %v1182, 2
        %v1207 = vrot.slane %v1183, 2
        %v1208 = vsel %vm973, %v1206, %v1207
        %v1209 = vrot.slane %v1184, 2
        %v1210 = vsel %vm973, %v1207, %v1209
        %v1211 = vrot.slane %v1185, 2
        %v1212 = vrot.slane %v1186, 2
        %v1213 = vsel %vm973, %v1211, %v1212
        %v1214 = vrot.slane %v1187, 2
        %v1215 = vsel %vm973, %v1212, %v1214
        %v1216 = vrot.slane %v1188, 2
        %v1217 = vrot.slane %v1189, 2
        %v1218 = vsel %vm973, %v1216, %v1217
        %v1219 = vrot.slane %v1190, 2
        %v1220 = vsel %vm973, %v1217, %v1219
        %v1221 = vrot.slane %v1191, 2
        %v1222 = vrot.slane %v1192, 2
        %v1223 = vsel %vm973, %v1221, %v1222
        %v1224 = vrot.slane %v1193, 2
        %v1225 = vsel %vm973, %v1222, %v1224
        %1226 = vrot.lane.b32.xlu0 %v1208, 126
        %v1227 = vpop.permute.xlu0 %1226
        %1228 = vrot.lane.b32.xlu0 %v1210, 126
        %v1229 = vpop.permute.xlu0 %1228
        %1230 = vrot.lane.b32.xlu0 %v1213, 126
        %v1231 = vpop.permute.xlu0 %1230
        %1232 = vrot.lane.b32.xlu0 %v1215, 126
        %v1233 = vpop.permute.xlu0 %1232
        %1234 = vrot.lane.b32.xlu0 %v1218, 126
        %v1235 = vpop.permute.xlu0 %1234
        %1236 = vrot.lane.b32.xlu0 %v1220, 126
        %v1237 = vpop.permute.xlu0 %1236
        %1238 = vrot.lane.b32.xlu0 %v1223, 126
        %v1239 = vpop.permute.xlu0 %1238
        %1240 = vrot.lane.b32.xlu0 %v1225, 126
        %v1241 = vpop.permute.xlu0 %1240
        %v1250 = vadd.f32 %v1126, %v1227
        %v1251 = vadd.f32 %v1127, %v1229
        %v1252 = vadd.f32 %v1128, %v1231
        %v1253 = vadd.f32 %v1129, %v1233
        %v1254 = vadd.f32 %v1130, %v1235
        %v1255 = vadd.f32 %v1131, %v1237
        %v1256 = vadd.f32 %v1132, %v1239
        %v1257 = vadd.f32 %v1133, %v1241
        %vm1258 = vcmask 130048
        %1259 = vst.msk [vmem:[%s226] sm:$0xff] %vm1258, %v1250
        %1260 = vst.msk [vmem:[%s226 + $0x8] sm:$0xff] %vm1258, %v1251
        %1261 = vst.msk [vmem:[%s226 + $0x10] sm:$0xff] %vm1258, %v1252
        %1262 = vst.msk [vmem:[%s226 + $0x18] sm:$0xff] %vm1258, %v1253
        %1263 = vst.msk [vmem:[%s226 + $0x20] sm:$0xff] %vm1258, %v1254
        %1264 = vst.msk [vmem:[%s226 + $0x28] sm:$0xff] %vm1258, %v1255
        %1265 = vst.msk [vmem:[%s226 + $0x30] sm:$0xff] %vm1258, %v1256
        %1266 = vst.msk [vmem:[%s226 + $0x38] sm:$0xff] %vm1258, %v1257
        %v1267 = vsel %vm1258, %v1250, 0.0
        %1268 = vadd.xlane.f32.xlu0 %v1267
        %v1269 = vpop.xlane.xlu0 %1268
        %v1270 = vsel %vm1258, %v1251, 0.0
        %1271 = vadd.xlane.f32.xlu0 %v1270
        %v1272 = vpop.xlane.xlu0 %1271
        %v1273 = vsel %vm1258, %v1252, 0.0
        %1274 = vadd.xlane.f32.xlu0 %v1273
        %v1275 = vpop.xlane.xlu0 %1274
        %v1276 = vsel %vm1258, %v1253, 0.0
        %1277 = vadd.xlane.f32.xlu0 %v1276
        %v1278 = vpop.xlane.xlu0 %1277
        %v1279 = vsel %vm1258, %v1254, 0.0
        %1280 = vadd.xlane.f32.xlu0 %v1279
        %v1281 = vpop.xlane.xlu0 %1280
        %v1282 = vsel %vm1258, %v1255, 0.0
        %1283 = vadd.xlane.f32.xlu0 %v1282
        %v1284 = vpop.xlane.xlu0 %1283
        %v1285 = vsel %vm1258, %v1256, 0.0
        %1286 = vadd.xlane.f32.xlu0 %v1285
        %v1287 = vpop.xlane.xlu0 %1286
        %v1288 = vsel %vm1258, %v1257, 0.0
        %1289 = vadd.xlane.f32.xlu0 %v1288
        %v1290 = vpop.xlane.xlu0 %1289
        %v1291 = vadd.f32 %v1269, %v1272
        %v1292 = vrot.slane %v1291, 4
        %v1293 = vadd.f32 %v1291, %v1292
        %v1294 = vrot.slane %v1293, 2
        %v1295 = vadd.f32 %v1293, %v1294
        %v1296 = vrot.slane %v1295, 1
        %v1297 = vadd.f32 %v1295, %v1296
        %v1298 = vadd.f32 %v1275, %v1278
        %v1299 = vrot.slane %v1298, 4
        %v1300 = vadd.f32 %v1298, %v1299
        %v1301 = vrot.slane %v1300, 2
        %v1302 = vadd.f32 %v1300, %v1301
        %v1303 = vrot.slane %v1302, 1
        %v1304 = vadd.f32 %v1302, %v1303
        %v1305 = vadd.f32 %v1281, %v1284
        %v1306 = vrot.slane %v1305, 4
        %v1307 = vadd.f32 %v1305, %v1306
        %v1308 = vrot.slane %v1307, 2
        %v1309 = vadd.f32 %v1307, %v1308
        %v1310 = vrot.slane %v1309, 1
        %v1311 = vadd.f32 %v1309, %v1310
        %v1312 = vadd.f32 %v1287, %v1290
        %v1313 = vrot.slane %v1312, 4
        %v1314 = vadd.f32 %v1312, %v1313
        %v1315 = vrot.slane %v1314, 2
        %v1316 = vadd.f32 %v1314, %v1315
        %v1317 = vrot.slane %v1316, 1
        %v1318 = vadd.f32 %v1316, %v1317
        %v1319 = vmul.f32 %v1250, %v1250
        %v1320 = vmul.f32 %v1251, %v1251
        %v1321 = vmul.f32 %v1252, %v1252
        %v1322 = vmul.f32 %v1253, %v1253
        %v1323 = vmul.f32 %v1254, %v1254
        %v1324 = vmul.f32 %v1255, %v1255
        %v1325 = vmul.f32 %v1256, %v1256
        %v1326 = vmul.f32 %v1257, %v1257
        %v1327 = vsel %vm1258, %v1319, 0.0
        %1328 = vadd.xlane.f32.xlu0 %v1327
        %v1329 = vpop.xlane.xlu0 %1328
        %v1330 = vsel %vm1258, %v1320, 0.0
        %1331 = vadd.xlane.f32.xlu0 %v1330
        %v1332 = vpop.xlane.xlu0 %1331
        %v1333 = vsel %vm1258, %v1321, 0.0
        %1334 = vadd.xlane.f32.xlu0 %v1333
        %v1335 = vpop.xlane.xlu0 %1334
        %v1336 = vsel %vm1258, %v1322, 0.0
        %1337 = vadd.xlane.f32.xlu0 %v1336
        %v1338 = vpop.xlane.xlu0 %1337
        %v1339 = vsel %vm1258, %v1323, 0.0
        %1340 = vadd.xlane.f32.xlu0 %v1339
        %v1341 = vpop.xlane.xlu0 %1340
        %v1342 = vsel %vm1258, %v1324, 0.0
        %1343 = vadd.xlane.f32.xlu0 %v1342
        %v1344 = vpop.xlane.xlu0 %1343
        %v1345 = vsel %vm1258, %v1325, 0.0
        %1346 = vadd.xlane.f32.xlu0 %v1345
        %v1347 = vpop.xlane.xlu0 %1346
        %v1348 = vsel %vm1258, %v1326, 0.0
        %1349 = vadd.xlane.f32.xlu0 %v1348
        %v1350 = vpop.xlane.xlu0 %1349
        %v1351 = vadd.f32 %v1329, %v1332
        %v1352 = vrot.slane %v1351, 4
        %v1353 = vadd.f32 %v1351, %v1352
        %v1354 = vrot.slane %v1353, 2
        %v1355 = vadd.f32 %v1353, %v1354
        %v1356 = vrot.slane %v1355, 1
        %v1357 = vadd.f32 %v1355, %v1356
        %v1358 = vadd.f32 %v1335, %v1338
        %v1359 = vrot.slane %v1358, 4
        %v1360 = vadd.f32 %v1358, %v1359
        %v1361 = vrot.slane %v1360, 2
        %v1362 = vadd.f32 %v1360, %v1361
        %v1363 = vrot.slane %v1362, 1
        %v1364 = vadd.f32 %v1362, %v1363
        %v1365 = vadd.f32 %v1341, %v1344
        %v1366 = vrot.slane %v1365, 4
        %v1367 = vadd.f32 %v1365, %v1366
        %v1368 = vrot.slane %v1367, 2
        %v1369 = vadd.f32 %v1367, %v1368
        %v1370 = vrot.slane %v1369, 1
        %v1371 = vadd.f32 %v1369, %v1370
        %v1372 = vadd.f32 %v1347, %v1350
        %v1373 = vrot.slane %v1372, 4
        %v1374 = vadd.f32 %v1372, %v1373
        %v1375 = vrot.slane %v1374, 2
        %v1376 = vadd.f32 %v1374, %v1375
        %v1377 = vrot.slane %v1376, 1
        %v1378 = vadd.f32 %v1376, %v1377
        // Predicated region
        $region37: #{tpu_custom_call.1} parent=27 // pred_check
          %p1379 = pneg %p247
        $region38: #{tpu_custom_call.1} parent=27 // pred_check_branch
          %1381 = sbr.rel (%p1379) target = $region40
        $region39: #{tpu_custom_call.1} parent=27 // pred_region
          %vm1382 = vcmask 8192
          %1383 = vst.msk [vmem:[%s245] sm:$0x1] %vm1382, 0.0
          %1384 = vst.msk [vmem:[%s245 + $0x1] sm:$0x1] %vm1382, 0.0
          %1385 = vst.msk [vmem:[%s245 + $0x2] sm:$0x1] %vm1382, 0.0
          %1386 = vst.msk [vmem:[%s245 + $0x3] sm:$0x1] %vm1382, 0.0
        $region40: #{tpu_custom_call.1} parent=27 // pred_fallthru
          _
        %v1387 = vld [vmem:[%s245] sm:$0x1]
        %v1388 = vld [vmem:[%s245 + $0x1] sm:$0x1]
        %v1389 = vld [vmem:[%s245 + $0x2] sm:$0x1]
        %v1390 = vld [vmem:[%s245 + $0x3] sm:$0x1]
        %v1391 = vadd.f32 %v1387, %v1297
        %v1392 = vadd.f32 %v1388, %v1304
        %v1393 = vadd.f32 %v1389, %v1311
        %v1394 = vadd.f32 %v1390, %v1318
        %vm1395 = vcmask 0
        %1396 = vst.msk [vmem:[%s245] sm:$0x1] %vm1395, %v1391
        %1397 = vst.msk [vmem:[%s245 + $0x1] sm:$0x1] %vm1395, %v1392
        %1398 = vst.msk [vmem:[%s245 + $0x2] sm:$0x1] %vm1395, %v1393
        %1399 = vst.msk [vmem:[%s245 + $0x3] sm:$0x1] %vm1395, %v1394
        %v1400 = vld [vmem:[%s245] sm:$0x1]
        %v1401 = vld [vmem:[%s245 + $0x1] sm:$0x1]
        %v1402 = vld [vmem:[%s245 + $0x2] sm:$0x1]
        %v1403 = vld [vmem:[%s245 + $0x3] sm:$0x1]
        %v1404 = vadd.f32 %v1400, %v1357
        %v1405 = vadd.f32 %v1401, %v1364
        %v1406 = vadd.f32 %v1402, %v1371
        %v1407 = vadd.f32 %v1403, %v1378
        %vm1408 = vcmask 8200
        %1409 = vst.msk [vmem:[%s245] sm:$0x1] %vm1408, %v1404
        %1410 = vst.msk [vmem:[%s245 + $0x1] sm:$0x1] %vm1408, %v1405
        %1411 = vst.msk [vmem:[%s245 + $0x2] sm:$0x1] %vm1408, %v1406
        %1412 = vst.msk [vmem:[%s245 + $0x3] sm:$0x1] %vm1408, %v1407
        %s1413 = sand.u32 %s97, 1
        %s1414 = scalar_lea.sflag [#allocation5], %s1413
        %s1415 = sand.u32 %s97, 1
        %s1416 = smul.addr %s1415, 64
        %s1417 = scalar_lea.vmem [#allocation6], %s1416
        %s1418 = smul.u32 4, %s25
        %p1419 = scmp.lt.s32.totalorder %s1418, 3
        %s1420 = scalar_select %p1419, %s1418, 3
        %s1421 = scalar_lea.vmem %s3, %s1420
        // Predicated region
        $region41: #{tpu_custom_call.1} parent=27 // pred_check
          %p1422 = pneg %p107
        $region42: #{tpu_custom_call.1} parent=27 // pred_check_branch
          %1424 = sbr.rel (%p1422) target = $region44
        $region43: #{tpu_custom_call.1} parent=27 // pred_region
          %s1425 = smul.u32 4, %s25
          %s1427 = ssub.s32 1024, 1024
          %1428 = vsyncadd %s1414, %s1427
          %s1429 = smul.addr %s1425, 2
          %s1430 = smul.addr %s26, 8
          %s1431 = sadd.s32 %s1429, %s1430
          %s1432 = smul.addr %s1431, 128
          %s1433 = scalar_lea.hbm %s2, %s1432
          %s1434 = sshll.u32 %s1417, 4
          %s1435 = int_to_ptr.vmem [resolvable:$true] %s1434
          %1440 = dma.vmem_to_hbm [thread:$0]  %s1435, 1024, %s1433, %s1414, 128, 128, 8
        $region44: #{tpu_custom_call.1} parent=27 // pred_fallthru
          _
        // Predicated region
        $region45: #{tpu_custom_call.1} parent=27 // pred_check
          %p1441 = pneg %p133
        $region46: #{tpu_custom_call.1} parent=27 // pred_check_branch
          %1443 = sbr.rel (%p1441) target = $region48
        $region47: #{tpu_custom_call.1} parent=27 // pred_region
          %s1444 = smul.u32 4, %s25
        $region48: #{tpu_custom_call.1} parent=27 // pred_fallthru
          _
        // Predicated region
        $region49: #{tpu_custom_call.1} parent=27 // pred_check
          %p1445 = pneg %p133
        $region50: #{tpu_custom_call.1} parent=27 // pred_check_branch
          %1447 = sbr.rel (%p1445) target = $region52
        $region51: #{tpu_custom_call.1} parent=27 // pred_region
          %s1448 = smul.u32 4, %s25
          %p1449 = scmp.lt.s32.totalorder %s1448, 3
          %s1450 = scalar_select %p1449, %s1448, 3
          %s1451 = scalar_lea.vmem %s3, %s1450
        $region52: #{tpu_custom_call.1} parent=27 // pred_fallthru
          _
      $region28: #{tpu_custom_call.1} parent=5 // pred_fallthru
        _
      %p1452 = scmp.le.s32.totalorder 2, %s16
      // Predicated region
      $region53: #{tpu_custom_call.1} parent=5 // pred_check
        %p1453 = pneg %p1452
      $region54: #{tpu_custom_call.1} parent=5 // pred_check_branch
        %1455 = sbr.rel (%p1453) target = $region56
      $region55: #{tpu_custom_call.1} parent=5 // pred_region
        %s1456 = ssub.s32 %s16, 2
        // Predicated region
        $region57: #{tpu_custom_call.1} parent=55 // pred_check
          %p1457 = pneg %p113
        $region58: #{tpu_custom_call.1} parent=55 // pred_check_branch
          %1459 = sbr.rel (%p1457) target = $region60
        $region59: #{tpu_custom_call.1} parent=55 // pred_region
          %s1460 = sand.u32 %s98, 1
          %s1461 = scalar_lea.sflag [#allocation5], %s1460
          %s1462 = sand.u32 %s98, 1
          %s1463 = smul.addr %s1462, 64
          %s1464 = scalar_lea.vmem [#allocation6], %s1463
          %1465 = dma.done %s1461, 1024
        $region60: #{tpu_custom_call.1} parent=55 // pred_fallthru
          _
      $region56: #{tpu_custom_call.1} parent=5 // pred_fallthru
        _
    $region6: #{tpu_custom_call.1} parent=1 // loop_footer
      %s20 = sadd.s32 1, %s16
    $region7: #{tpu_custom_call.1} parent=1 // loop_footer_branch
      %15 = sbr.rel target = $region3
    $region8: #{tpu_custom_call.1} parent=1 // loop_exit
      _
    %1466 = vsyncpa [#allocation4], 1
    %s1467 = scalar_lea.sflag [#allocation4], 1
    %1468 = vsyncpa %s1467, 1
    %1469 = vsyncpa [#allocation5], 1
    %s1470 = scalar_lea.sflag [#allocation5], 1
    %1471 = vsyncpa %s1470, 1

</llo_original>
